<compile_context>
chip_gen: v5e
topology: v5e:2x2
jax: 0.10.0
libtpu: 0.0.40
codegen_flags: <defaults>
</compile_context>

<pallas_src>
import functools

import jax
import jax.numpy as jnp
from jax.experimental import pallas as pl
from jax.experimental.pallas import tpu as pltpu


# ----------------------------------------------------------------------------
# Fused Pallas kernel
# ----------------------------------------------------------------------------
def _cbhg_fused_kernel(*refs, B, T, C_in, conv_ks, conv_cs, conv_relu, L, D, H):
    f32 = jnp.float32
    nconv = len(conv_ks)

    it = iter(refs)
    xp_ref = next(it)                                       # (B, T+K0-1, C_in)
    conv_wb = [(next(it), next(it)) for _ in range(nconv)]  # [(W_col, bias), ...]
    whh_ref, bhh_ref, wht_ref, bht_ref = [next(it) for _ in range(4)]
    (wi_f_ref, wh_f_ref, bi_f_ref, bh_f_ref,
     wi_b_ref, wh_b_ref, bi_b_ref, bh_b_ref) = [next(it) for _ in range(8)]
    out_ref = next(it)                                      # (B, T, 2H)
    hid_ref = next(it)                                      # (2, T, H)
    pad_refs = list(it)                                     # VMEM pads for bank layers >0

    xp = xp_ref[...].astype(f32)
    pad_l0 = (conv_ks[0] - 1) // 2
    # residual branch = original (channels-last) input
    x_res = xp[:, pad_l0:pad_l0 + T, :].reshape(B * T, C_in)

    # ---- conv stack: im2col matmuls over the whole batch (M = B*T) ----------
    h = None
    c_prev = C_in
    pad_i = 0
    for i in range(nconv):
        K = conv_ks[i]
        w_ref, b_ref = conv_wb[i]
        if K == 1 and i > 0:
            cols = h                                        # (B*T, c_prev)
        else:
            if i == 0:
                src = xp                                    # padded host-side
            else:
                pr = pad_refs[pad_i]
                pad_i += 1
                pr[...] = jnp.zeros_like(pr)                # zero halo
                off = (K - 1) // 2
                pr[:, off:off + T, :] = h.reshape(B, T, c_prev)
                src = pr[...]
            cols = jnp.concatenate([src[:, k:k + T, :] for k in range(K)],
                                   axis=-1)
            cols = cols.reshape(B * T, K * c_prev)
        acc = jnp.dot(cols, w_ref[...].astype(f32),
                      preferred_element_type=f32) + b_ref[...].astype(f32)
        if conv_relu[i]:
            acc = jnp.maximum(acc, 0.0)
        h = acc
        c_prev = conv_cs[i]

    # ---- residual + highway stack -------------------------------------------
    # TODO(synk): the lazily-created `dimsChange` Linear branch of the reference
    # is skipped; it only fires when conv-out channels != highwaySize (asserted
    # equal in the wrapper for this config).
    hw = x_res + h                                          # (B*T, D)
    whh = whh_ref[...].astype(f32)                          # (L, D, D) pre-transposed
    bhh = bhh_ref[...].astype(f32)                          # (L, 1, D)
    wht = wht_ref[...].astype(f32)
    bht = bht_ref[...].astype(f32)
    for l in range(L):
        h_lin = jnp.maximum(
            jnp.dot(hw, whh[l], preferred_element_type=f32) + bhh[l], 0.0)
        t_gate = jax.nn.sigmoid(
            jnp.dot(hw, wht[l], preferred_element_type=f32) + bht[l])
        hw = h_lin * t_gate + hw * (1.0 - t_gate)

    # ---- bidirectional GRU (seq = B, "batch" = T, matching batch_first=False)
    N = T
    seq = hw.reshape(B, T, D)

    def run_dir(wi_ref, wh_ref, bi_ref, bh_ref, reverse):
        wi = wi_ref[...].astype(f32)                        # (3, D, H): r, z, n
        wh = wh_ref[...].astype(f32)                        # (3, H, H)
        bi = bi_ref[...].astype(f32)                        # (3, 1, H)
        bh = bh_ref[...].astype(f32)                        # (3, 1, H)
        # bias broadcasts hoisted out of the unrolled time loop
        b_r = jnp.broadcast_to(bi[0] + bh[0], (N, H))
        b_z = jnp.broadcast_to(bi[1] + bh[1], (N, H))
        b_in = jnp.broadcast_to(bi[2], (N, H))
        b_hn = jnp.broadcast_to(bh[2], (N, H))
        hcur = jnp.zeros((N, H), f32)
        outs = [None] * B
        steps = range(B - 1, -1, -1) if reverse else range(B)
        for t in steps:                                     # tiny static seq -> unrolled
            x_t = seq[t]                                    # (N, D)
            r = jax.nn.sigmoid(
                jnp.dot(x_t, wi[0], preferred_element_type=f32)
                + jnp.dot(hcur, wh[0], preferred_element_type=f32) + b_r)
            z = jax.nn.sigmoid(
                jnp.dot(x_t, wi[1], preferred_element_type=f32)
                + jnp.dot(hcur, wh[1], preferred_element_type=f32) + b_z)
            n = jnp.tanh(
                jnp.dot(x_t, wi[2], preferred_element_type=f32) + b_in
                + r * (jnp.dot(hcur, wh[2], preferred_element_type=f32) + b_hn))
            hcur = (1.0 - z) * n + z * hcur
            outs[t] = hcur
        return outs, hcur

    outs_f, h_f = run_dir(wi_f_ref, wh_f_ref, bi_f_ref, bh_f_ref, False)
    outs_b, h_b = run_dir(wi_b_ref, wh_b_ref, bi_b_ref, bh_b_ref, True)

    # single full stores at finalize (no per-step masked partial stores)
    out_ref[...] = jnp.stack(
        [jnp.concatenate([outs_f[t], outs_b[t]], axis=-1) for t in range(B)],
        axis=0).astype(out_ref.dtype)
    hid_ref[...] = jnp.stack([h_f, h_b], axis=0).astype(hid_ref.dtype)


# ----------------------------------------------------------------------------
# Wrapper: pack weights once, return a jitted fused forward
# ----------------------------------------------------------------------------
def make_cbhg_forward(params):
    conv_layers = [(w, b, True) for (w, b, _pool) in params['conv_bank']]
    # TODO(synk): ConvModel1D's pooling branch is undefined in the reference
    # snippet; all pool flags are False in this config.
    w_last, b_last = params['last_conv']
    conv_layers.append((w_last, b_last, False))             # lastConv: no ReLU

    conv_ks = tuple(int(w.shape[2]) for (w, _b, _r) in conv_layers)
    conv_cs = tuple(int(w.shape[0]) for (w, _b, _r) in conv_layers)
    conv_relu = tuple(bool(r) for (_w, _b, r) in conv_layers)
    C_in = int(conv_layers[0][0].shape[1])

    hw_layers = params['highway']
    L = len(hw_layers)
    D = int(hw_layers[0][0].shape[0])
    gru = params['gru']
    H = int(gru['wh_f'].shape[1])

    # residual add + skipped dimsChange require these to match in this config
    assert conv_cs[-1] == C_in == D, (conv_cs[-1], C_in, D)

    # ---- pack weights (host-side, once; kernel-friendly layouts) ------------
    weight_args = []
    c_prev = C_in
    for (w, b, _r) in conv_layers:                          # im2col weight layout
        K = int(w.shape[2])
        weight_args.append(
            jnp.transpose(w, (2, 1, 0)).reshape(K * c_prev, int(w.shape[0])))
        weight_args.append(b.reshape(1, -1))
        c_prev = int(w.shape[0])
    weight_args.append(jnp.stack([wh.T for (wh, _bh, _wt, _bt) in hw_layers]))
    weight_args.append(jnp.stack([bh.reshape(1, D) for (_wh, bh, _wt, _bt) in hw_layers]))
    weight_args.append(jnp.stack([wt.T for (_wh, _bh, wt, _bt) in hw_layers]))
    weight_args.append(jnp.stack([bt.reshape(1, D) for (_wh, _bh, _wt, bt) in hw_layers]))
    for d in ('f', 'b'):                                    # pre-split r/z/n, pre-transposed
        weight_args.append(jnp.transpose(gru['wi_' + d].reshape(3, H, D), (0, 2, 1)))
        weight_args.append(jnp.transpose(gru['wh_' + d].reshape(3, H, H), (0, 2, 1)))
        weight_args.append(gru['bi_' + d].reshape(3, 1, H))
        weight_args.append(gru['bh_' + d].reshape(3, 1, H))

    def forward(inp):
        B, c_in, T = inp.shape
        assert c_in == C_in, (c_in, C_in)

        # layout plumbing only: channels-last + zero halo for the first conv
        K0 = conv_ks[0]
        lpad, rpad = (K0 - 1) // 2, (K0 - 1) - (K0 - 1) // 2
        xp = jnp.pad(jnp.transpose(inp, (0, 2, 1)), ((0, 0), (lpad, rpad), (0, 0)))

        scratch = []
        cp = C_in
        for i, K in enumerate(conv_ks):
            if i > 0 and K > 1:
                scratch.append(pltpu.VMEM((B, T + K - 1, cp), jnp.float32))
            cp = conv_cs[i]

        kern = functools.partial(
            _cbhg_fused_kernel, B=B, T=T, C_in=C_in, conv_ks=conv_ks,
            conv_cs=conv_cs, conv_relu=conv_relu, L=L, D=D, H=H)
        return pl.pallas_call(
            kern,
            out_shape=(jax.ShapeDtypeStruct((B, T, 2 * H), inp.dtype),
                       jax.ShapeDtypeStruct((2, T, H), inp.dtype)),
            scratch_shapes=tuple(scratch),
        )(xp, *weight_args)

    return jax.jit(forward)


# ----------------------------------------------------------------------------
# Parameters (same init scheme / RNG stream as before)
# ----------------------------------------------------------------------------
def _uniform(key, shape, scale):
    return jax.random.uniform(key, shape, jnp.float32, -scale, scale)


def init_params(key, in_ch, conv_specs, highway_specs, gru_len):
    n_layers, hw_size = highway_specs
    keys = iter(jax.random.split(key, 64))
    params = {}

    conv_bank = []
    c_prev = in_ch
    for (k_w, c_out, pool) in conv_specs[:-1]:
        s = 1.0 / (c_prev * k_w) ** 0.5
        conv_bank.append((_uniform(next(keys), (c_out, c_prev, k_w), s),
                          _uniform(next(keys), (c_out,), s),
                          pool))
        c_prev = c_out
    params['conv_bank'] = conv_bank

    k_w, c_out, _ = conv_specs[-1]
    s = 1.0 / (c_prev * k_w) ** 0.5
    params['last_conv'] = (_uniform(next(keys), (c_out, c_prev, k_w), s),
                           _uniform(next(keys), (c_out,), s))

    s = 1.0 / hw_size ** 0.5
    params['highway'] = [
        (_uniform(next(keys), (hw_size, hw_size), s),
         _uniform(next(keys), (hw_size,), s),
         _uniform(next(keys), (hw_size, hw_size), s),
         _uniform(next(keys), (hw_size,), s))
        for _ in range(n_layers)
    ]

    H = gru_len
    s = 1.0 / H ** 0.5
    gru = {}
    for d in ('f', 'b'):
        gru['wi_' + d] = _uniform(next(keys), (3 * H, hw_size), s)
        gru['wh_' + d] = _uniform(next(keys), (3 * H, H), s)
        gru['bi_' + d] = _uniform(next(keys), (3 * H,), s)
        gru['bh_' + d] = _uniform(next(keys), (3 * H,), s)
    params['gru'] = gru
    return params


# ----------------------------------------------------------------------------
if __name__ == "__main__":
    key = jax.random.PRNGKey(0)
    k_inp, k_par = jax.random.split(key)

    B, C_in, T = 2, 16, 16
    conv_specs = [[3, 32, False], [3, 32, False], [1, 16, None]]
    highway_specs = [2, 16]   # [num_layers, size]; size == C_in so residual/dims match
    gru_len = 16

    params = init_params(k_par, C_in, conv_specs, highway_specs, gru_len)
    x = jax.random.normal(k_inp, (B, C_in, T), jnp.float32)

    forward = make_cbhg_forward(params)
    out, hidden = forward(x)
    jax.block_until_ready((out, hidden))

    assert out.shape == (B, T, 2 * gru_len), out.shape
    assert hidden.shape == (2, T, gru_len), hidden.shape
    print("KERNEL_OK")
</pallas_src>

<mosaic_0001>
module attributes {stable_mosaic.version = 11 : i64} {
  func.func @_cbhg_fused_kernel(%arg0: memref<2x18x16xf32, #tpu.memory_space<vmem>>, %arg1: memref<48x32xf32, #tpu.memory_space<vmem>>, %arg2: memref<1x32xf32, #tpu.memory_space<vmem>>, %arg3: memref<96x32xf32, #tpu.memory_space<vmem>>, %arg4: memref<1x32xf32, #tpu.memory_space<vmem>>, %arg5: memref<32x16xf32, #tpu.memory_space<vmem>>, %arg6: memref<1x16xf32, #tpu.memory_space<vmem>>, %arg7: memref<2x16x16xf32, #tpu.memory_space<vmem>>, %arg8: memref<2x1x16xf32, #tpu.memory_space<vmem>>, %arg9: memref<2x16x16xf32, #tpu.memory_space<vmem>>, %arg10: memref<2x1x16xf32, #tpu.memory_space<vmem>>, %arg11: memref<3x16x16xf32, #tpu.memory_space<vmem>>, %arg12: memref<3x16x16xf32, #tpu.memory_space<vmem>>, %arg13: memref<3x1x16xf32, #tpu.memory_space<vmem>>, %arg14: memref<3x1x16xf32, #tpu.memory_space<vmem>>, %arg15: memref<3x16x16xf32, #tpu.memory_space<vmem>>, %arg16: memref<3x16x16xf32, #tpu.memory_space<vmem>>, %arg17: memref<3x1x16xf32, #tpu.memory_space<vmem>>, %arg18: memref<3x1x16xf32, #tpu.memory_space<vmem>>, %arg19: memref<2x16x32xf32, #tpu.memory_space<vmem>>, %arg20: memref<2x16x16xf32, #tpu.memory_space<vmem>>, %arg21: memref<2x18x32xf32, #tpu.memory_space<vmem>>) attributes {dimension_semantics = [], scalar_prefetch = 0 : i64, scratch_operands = 1 : i64, tpu.core_type = #tpu.core_type<tc>} {
    %c0 = arith.constant 0 : index
    %c0_0 = arith.constant 0 : index
    %c0_1 = arith.constant 0 : index
    %0 = vector.load %arg0[%c0, %c0_0, %c0_1] : memref<2x18x16xf32, #tpu.memory_space<vmem>>, vector<2x18x16xf32>
    %1 = vector.extract_strided_slice %0 {offsets = [0, 1, 0], sizes = [2, 16, 16], strides = [1, 1, 1]} : vector<2x18x16xf32> to vector<2x16x16xf32>
    %2 = vector.shape_cast %1 : vector<2x16x16xf32> to vector<32x16xf32>
    %3 = vector.extract_strided_slice %0 {offsets = [0, 0, 0], sizes = [2, 16, 16], strides = [1, 1, 1]} : vector<2x18x16xf32> to vector<2x16x16xf32>
    %4 = vector.extract_strided_slice %0 {offsets = [0, 1, 0], sizes = [2, 16, 16], strides = [1, 1, 1]} : vector<2x18x16xf32> to vector<2x16x16xf32>
    %5 = vector.extract_strided_slice %0 {offsets = [0, 2, 0], sizes = [2, 16, 16], strides = [1, 1, 1]} : vector<2x18x16xf32> to vector<2x16x16xf32>
    %6 = tpu.concatenate %3, %4, %5 in 2 : vector<2x16x16xf32>, vector<2x16x16xf32>, vector<2x16x16xf32> -> vector<2x16x48xf32>
    %7 = vector.shape_cast %6 : vector<2x16x48xf32> to vector<32x48xf32>
    %c0_2 = arith.constant 0 : index
    %c0_3 = arith.constant 0 : index
    %8 = vector.load %arg1[%c0_2, %c0_3] : memref<48x32xf32, #tpu.memory_space<vmem>>, vector<48x32xf32>
    %cst = arith.constant dense<0.000000e+00> : vector<32x32xf32>
    %9 = tpu.matmul %7, %8, %cst {dimension_numbers = #tpu.dot_dimension_numbers<[1], [0], [0], [1], [0, 0, 1, 1], [], []>} : vector<32x48xf32>, vector<48x32xf32>, vector<32x32xf32> -> vector<32x32xf32>
    %c0_4 = arith.constant 0 : index
    %c0_5 = arith.constant 0 : index
    %10 = vector.load %arg2[%c0_4, %c0_5] : memref<1x32xf32, #tpu.memory_space<vmem>>, vector<1x32xf32>
    %11 = vector.broadcast %10 : vector<1x32xf32> to vector<32x32xf32>
    %12 = arith.addf %9, %11 : vector<32x32xf32>
    %cst_6 = arith.constant 0.000000e+00 : f32
    %13 = vector.broadcast %cst_6 : f32 to vector<32x32xf32>
    %14 = arith.maximumf %12, %13 : vector<32x32xf32>
    %cst_7 = arith.constant 0.000000e+00 : f32
    %15 = vector.broadcast %cst_7 : f32 to vector<2x18x32xf32>
    %c0_8 = arith.constant 0 : index
    %c0_9 = arith.constant 0 : index
    %c0_10 = arith.constant 0 : index
    %16 = vector.load %arg21[%c0_8, %c0_9, %c0_10] : memref<2x18x32xf32, #tpu.memory_space<vmem>>, vector<2x18x32xf32>
    tpu.vector_store %arg21[%c0_8, %c0_9, %c0_10], %15 {strides = array<i32>} : memref<2x18x32xf32, #tpu.memory_space<vmem>>, vector<2x18x32xf32>,
    %17 = vector.shape_cast %14 : vector<32x32xf32> to vector<2x16x32xf32>
    %c0_11 = arith.constant 0 : index
    %c1 = arith.constant 1 : index
    %c0_12 = arith.constant 0 : index
    %18 = vector.load %arg21[%c0_11, %c1, %c0_12] : memref<2x18x32xf32, #tpu.memory_space<vmem>>, vector<2x16x32xf32>
    tpu.vector_store %arg21[%c0_11, %c1, %c0_12], %17 {strides = array<i32>} : memref<2x18x32xf32, #tpu.memory_space<vmem>>, vector<2x16x32xf32>,
    %c0_13 = arith.constant 0 : index
    %c0_14 = arith.constant 0 : index
    %c0_15 = arith.constant 0 : index
    %19 = vector.load %arg21[%c0_13, %c0_14, %c0_15] : memref<2x18x32xf32, #tpu.memory_space<vmem>>, vector<2x18x32xf32>
    %20 = vector.extract_strided_slice %19 {offsets = [0, 0, 0], sizes = [2, 16, 32], strides = [1, 1, 1]} : vector<2x18x32xf32> to vector<2x16x32xf32>
    %21 = vector.extract_strided_slice %19 {offsets = [0, 1, 0], sizes = [2, 16, 32], strides = [1, 1, 1]} : vector<2x18x32xf32> to vector<2x16x32xf32>
    %22 = vector.extract_strided_slice %19 {offsets = [0, 2, 0], sizes = [2, 16, 32], strides = [1, 1, 1]} : vector<2x18x32xf32> to vector<2x16x32xf32>
    %23 = tpu.concatenate %20, %21, %22 in 2 : vector<2x16x32xf32>, vector<2x16x32xf32>, vector<2x16x32xf32> -> vector<2x16x96xf32>
    %24 = vector.shape_cast %23 : vector<2x16x96xf32> to vector<32x96xf32>
    %c0_16 = arith.constant 0 : index
    %c0_17 = arith.constant 0 : index
    %25 = vector.load %arg3[%c0_16, %c0_17] : memref<96x32xf32, #tpu.memory_space<vmem>>, vector<96x32xf32>
    %cst_18 = arith.constant dense<0.000000e+00> : vector<32x32xf32>
    %26 = tpu.matmul %24, %25, %cst_18 {dimension_numbers = #tpu.dot_dimension_numbers<[1], [0], [0], [1], [0, 0, 1, 1], [], []>} : vector<32x96xf32>, vector<96x32xf32>, vector<32x32xf32> -> vector<32x32xf32>
    %c0_19 = arith.constant 0 : index
    %c0_20 = arith.constant 0 : index
    %27 = vector.load %arg4[%c0_19, %c0_20] : memref<1x32xf32, #tpu.memory_space<vmem>>, vector<1x32xf32>
    %28 = vector.broadcast %27 : vector<1x32xf32> to vector<32x32xf32>
    %29 = arith.addf %26, %28 : vector<32x32xf32>
    %cst_21 = arith.constant 0.000000e+00 : f32
    %30 = vector.broadcast %cst_21 : f32 to vector<32x32xf32>
    %31 = arith.maximumf %29, %30 : vector<32x32xf32>
    %c0_22 = arith.constant 0 : index
    %c0_23 = arith.constant 0 : index
    %32 = vector.load %arg5[%c0_22, %c0_23] : memref<32x16xf32, #tpu.memory_space<vmem>>, vector<32x16xf32>
    %cst_24 = arith.constant dense<0.000000e+00> : vector<32x16xf32>
    %33 = tpu.matmul %31, %32, %cst_24 {dimension_numbers = #tpu.dot_dimension_numbers<[1], [0], [0], [1], [0, 0, 1, 1], [], []>} : vector<32x32xf32>, vector<32x16xf32>, vector<32x16xf32> -> vector<32x16xf32>
    %c0_25 = arith.constant 0 : index
    %c0_26 = arith.constant 0 : index
    %34 = vector.load %arg6[%c0_25, %c0_26] : memref<1x16xf32, #tpu.memory_space<vmem>>, vector<1x16xf32>
    %35 = vector.broadcast %34 : vector<1x16xf32> to vector<32x16xf32>
    %36 = arith.addf %33, %35 : vector<32x16xf32>
    %37 = arith.addf %2, %36 : vector<32x16xf32>
    %c0_27 = arith.constant 0 : index
    %c0_28 = arith.constant 0 : index
    %c0_29 = arith.constant 0 : index
    %38 = vector.load %arg7[%c0_27, %c0_28, %c0_29] : memref<2x16x16xf32, #tpu.memory_space<vmem>>, vector<2x16x16xf32>
    %c0_30 = arith.constant 0 : index
    %c0_31 = arith.constant 0 : index
    %c0_32 = arith.constant 0 : index
    %39 = vector.load %arg8[%c0_30, %c0_31, %c0_32] : memref<2x1x16xf32, #tpu.memory_space<vmem>>, vector<2x1x16xf32>
    %c0_33 = arith.constant 0 : index
    %c0_34 = arith.constant 0 : index
    %c0_35 = arith.constant 0 : index
    %40 = vector.load %arg9[%c0_33, %c0_34, %c0_35] : memref<2x16x16xf32, #tpu.memory_space<vmem>>, vector<2x16x16xf32>
    %c0_36 = arith.constant 0 : index
    %c0_37 = arith.constant 0 : index
    %c0_38 = arith.constant 0 : index
    %41 = vector.load %arg10[%c0_36, %c0_37, %c0_38] : memref<2x1x16xf32, #tpu.memory_space<vmem>>, vector<2x1x16xf32>
    %42 = vector.extract_strided_slice %38 {offsets = [0, 0, 0], sizes = [1, 16, 16], strides = [1, 1, 1]} : vector<2x16x16xf32> to vector<1x16x16xf32>
    %43 = vector.shape_cast %42 : vector<1x16x16xf32> to vector<16x16xf32>
    %cst_39 = arith.constant dense<0.000000e+00> : vector<32x16xf32>
    %44 = tpu.matmul %37, %43, %cst_39 {dimension_numbers = #tpu.dot_dimension_numbers<[1], [0], [0], [1], [0, 0, 1, 1], [], []>} : vector<32x16xf32>, vector<16x16xf32>, vector<32x16xf32> -> vector<32x16xf32>
    %45 = vector.extract_strided_slice %39 {offsets = [0, 0, 0], sizes = [1, 1, 16], strides = [1, 1, 1]} : vector<2x1x16xf32> to vector<1x1x16xf32>
    %46 = vector.shape_cast %45 : vector<1x1x16xf32> to vector<1x16xf32>
    %47 = vector.broadcast %46 : vector<1x16xf32> to vector<32x16xf32>
    %48 = arith.addf %44, %47 : vector<32x16xf32>
    %cst_40 = arith.constant 0.000000e+00 : f32
    %49 = vector.broadcast %cst_40 : f32 to vector<32x16xf32>
    %50 = arith.maximumf %48, %49 : vector<32x16xf32>
    %51 = vector.extract_strided_slice %40 {offsets = [0, 0, 0], sizes = [1, 16, 16], strides = [1, 1, 1]} : vector<2x16x16xf32> to vector<1x16x16xf32>
    %52 = vector.shape_cast %51 : vector<1x16x16xf32> to vector<16x16xf32>
    %cst_41 = arith.constant dense<0.000000e+00> : vector<32x16xf32>
    %53 = tpu.matmul %37, %52, %cst_41 {dimension_numbers = #tpu.dot_dimension_numbers<[1], [0], [0], [1], [0, 0, 1, 1], [], []>} : vector<32x16xf32>, vector<16x16xf32>, vector<32x16xf32> -> vector<32x16xf32>
    %54 = vector.extract_strided_slice %41 {offsets = [0, 0, 0], sizes = [1, 1, 16], strides = [1, 1, 1]} : vector<2x1x16xf32> to vector<1x1x16xf32>
    %55 = vector.shape_cast %54 : vector<1x1x16xf32> to vector<1x16xf32>
    %56 = vector.broadcast %55 : vector<1x16xf32> to vector<32x16xf32>
    %57 = arith.addf %53, %56 : vector<32x16xf32>
    %58 = arith.negf %57 : vector<32x16xf32>
    %59 = math.exp %58 : vector<32x16xf32>
    %cst_42 = arith.constant 1.000000e+00 : f32
    %60 = vector.broadcast %cst_42 : f32 to vector<32x16xf32>
    %61 = arith.addf %60, %59 : vector<32x16xf32>
    %62 = arith.divf %60, %61 : vector<32x16xf32>
    %63 = arith.mulf %50, %62 : vector<32x16xf32>
    %cst_43 = arith.constant 1.000000e+00 : f32
    %64 = vector.broadcast %cst_43 : f32 to vector<32x16xf32>
    %65 = arith.subf %64, %62 : vector<32x16xf32>
    %66 = arith.mulf %37, %65 : vector<32x16xf32>
    %67 = arith.addf %63, %66 : vector<32x16xf32>
    %68 = vector.extract_strided_slice %38 {offsets = [1, 0, 0], sizes = [1, 16, 16], strides = [1, 1, 1]} : vector<2x16x16xf32> to vector<1x16x16xf32>
    %69 = vector.shape_cast %68 : vector<1x16x16xf32> to vector<16x16xf32>
    %cst_44 = arith.constant dense<0.000000e+00> : vector<32x16xf32>
    %70 = tpu.matmul %67, %69, %cst_44 {dimension_numbers = #tpu.dot_dimension_numbers<[1], [0], [0], [1], [0, 0, 1, 1], [], []>} : vector<32x16xf32>, vector<16x16xf32>, vector<32x16xf32> -> vector<32x16xf32>
    %71 = vector.extract_strided_slice %39 {offsets = [1, 0, 0], sizes = [1, 1, 16], strides = [1, 1, 1]} : vector<2x1x16xf32> to vector<1x1x16xf32>
    %72 = vector.shape_cast %71 : vector<1x1x16xf32> to vector<1x16xf32>
    %73 = vector.broadcast %72 : vector<1x16xf32> to vector<32x16xf32>
    %74 = arith.addf %70, %73 : vector<32x16xf32>
    %cst_45 = arith.constant 0.000000e+00 : f32
    %75 = vector.broadcast %cst_45 : f32 to vector<32x16xf32>
    %76 = arith.maximumf %74, %75 : vector<32x16xf32>
    %77 = vector.extract_strided_slice %40 {offsets = [1, 0, 0], sizes = [1, 16, 16], strides = [1, 1, 1]} : vector<2x16x16xf32> to vector<1x16x16xf32>
    %78 = vector.shape_cast %77 : vector<1x16x16xf32> to vector<16x16xf32>
    %cst_46 = arith.constant dense<0.000000e+00> : vector<32x16xf32>
    %79 = tpu.matmul %67, %78, %cst_46 {dimension_numbers = #tpu.dot_dimension_numbers<[1], [0], [0], [1], [0, 0, 1, 1], [], []>} : vector<32x16xf32>, vector<16x16xf32>, vector<32x16xf32> -> vector<32x16xf32>
    %80 = vector.extract_strided_slice %41 {offsets = [1, 0, 0], sizes = [1, 1, 16], strides = [1, 1, 1]} : vector<2x1x16xf32> to vector<1x1x16xf32>
    %81 = vector.shape_cast %80 : vector<1x1x16xf32> to vector<1x16xf32>
    %82 = vector.broadcast %81 : vector<1x16xf32> to vector<32x16xf32>
    %83 = arith.addf %79, %82 : vector<32x16xf32>
    %84 = arith.negf %83 : vector<32x16xf32>
    %85 = math.exp %84 : vector<32x16xf32>
    %cst_47 = arith.constant 1.000000e+00 : f32
    %86 = vector.broadcast %cst_47 : f32 to vector<32x16xf32>
    %87 = arith.addf %86, %85 : vector<32x16xf32>
    %88 = arith.divf %86, %87 : vector<32x16xf32>
    %89 = arith.mulf %76, %88 : vector<32x16xf32>
    %cst_48 = arith.constant 1.000000e+00 : f32
    %90 = vector.broadcast %cst_48 : f32 to vector<32x16xf32>
    %91 = arith.subf %90, %88 : vector<32x16xf32>
    %92 = arith.mulf %67, %91 : vector<32x16xf32>
    %93 = arith.addf %89, %92 : vector<32x16xf32>
    %94 = vector.shape_cast %93 : vector<32x16xf32> to vector<2x16x16xf32>
    %c0_49 = arith.constant 0 : index
    %c0_50 = arith.constant 0 : index
    %c0_51 = arith.constant 0 : index
    %95 = vector.load %arg11[%c0_49, %c0_50, %c0_51] : memref<3x16x16xf32, #tpu.memory_space<vmem>>, vector<3x16x16xf32>
    %c0_52 = arith.constant 0 : index
    %c0_53 = arith.constant 0 : index
    %c0_54 = arith.constant 0 : index
    %96 = vector.load %arg12[%c0_52, %c0_53, %c0_54] : memref<3x16x16xf32, #tpu.memory_space<vmem>>, vector<3x16x16xf32>
    %c0_55 = arith.constant 0 : index
    %c0_56 = arith.constant 0 : index
    %c0_57 = arith.constant 0 : index
    %97 = vector.load %arg13[%c0_55, %c0_56, %c0_57] : memref<3x1x16xf32, #tpu.memory_space<vmem>>, vector<3x1x16xf32>
    %c0_58 = arith.constant 0 : index
    %c0_59 = arith.constant 0 : index
    %c0_60 = arith.constant 0 : index
    %98 = vector.load %arg14[%c0_58, %c0_59, %c0_60] : memref<3x1x16xf32, #tpu.memory_space<vmem>>, vector<3x1x16xf32>
    %99 = vector.extract_strided_slice %97 {offsets = [0, 0, 0], sizes = [1, 1, 16], strides = [1, 1, 1]} : vector<3x1x16xf32> to vector<1x1x16xf32>
    %100 = vector.shape_cast %99 : vector<1x1x16xf32> to vector<1x16xf32>
    %101 = vector.extract_strided_slice %98 {offsets = [0, 0, 0], sizes = [1, 1, 16], strides = [1, 1, 1]} : vector<3x1x16xf32> to vector<1x1x16xf32>
    %102 = vector.shape_cast %101 : vector<1x1x16xf32> to vector<1x16xf32>
    %103 = arith.addf %100, %102 : vector<1x16xf32>
    %104 = vector.shape_cast %103 : vector<1x16xf32> to vector<1x16xf32>
    %105 = vector.broadcast %104 : vector<1x16xf32> to vector<16x16xf32>
    %106 = vector.extract_strided_slice %97 {offsets = [1, 0, 0], sizes = [1, 1, 16], strides = [1, 1, 1]} : vector<3x1x16xf32> to vector<1x1x16xf32>
    %107 = vector.shape_cast %106 : vector<1x1x16xf32> to vector<1x16xf32>
    %108 = vector.extract_strided_slice %98 {offsets = [1, 0, 0], sizes = [1, 1, 16], strides = [1, 1, 1]} : vector<3x1x16xf32> to vector<1x1x16xf32>
    %109 = vector.shape_cast %108 : vector<1x1x16xf32> to vector<1x16xf32>
    %110 = arith.addf %107, %109 : vector<1x16xf32>
    %111 = vector.shape_cast %110 : vector<1x16xf32> to vector<1x16xf32>
    %112 = vector.broadcast %111 : vector<1x16xf32> to vector<16x16xf32>
    %113 = vector.extract_strided_slice %97 {offsets = [2, 0, 0], sizes = [1, 1, 16], strides = [1, 1, 1]} : vector<3x1x16xf32> to vector<1x1x16xf32>
    %114 = vector.shape_cast %113 : vector<1x1x16xf32> to vector<1x16xf32>
    %115 = vector.shape_cast %114 : vector<1x16xf32> to vector<1x16xf32>
    %116 = vector.broadcast %115 : vector<1x16xf32> to vector<16x16xf32>
    %117 = vector.extract_strided_slice %98 {offsets = [2, 0, 0], sizes = [1, 1, 16], strides = [1, 1, 1]} : vector<3x1x16xf32> to vector<1x1x16xf32>
    %118 = vector.shape_cast %117 : vector<1x1x16xf32> to vector<1x16xf32>
    %119 = vector.shape_cast %118 : vector<1x16xf32> to vector<1x16xf32>
    %120 = vector.broadcast %119 : vector<1x16xf32> to vector<16x16xf32>
    %cst_61 = arith.constant 0.000000e+00 : f32
    %121 = vector.broadcast %cst_61 : f32 to vector<16x16xf32>
    %122 = vector.extract_strided_slice %94 {offsets = [0, 0, 0], sizes = [1, 16, 16], strides = [1, 1, 1]} : vector<2x16x16xf32> to vector<1x16x16xf32>
    %123 = vector.shape_cast %122 : vector<1x16x16xf32> to vector<16x16xf32>
    %124 = vector.extract_strided_slice %95 {offsets = [0, 0, 0], sizes = [1, 16, 16], strides = [1, 1, 1]} : vector<3x16x16xf32> to vector<1x16x16xf32>
    %125 = vector.shape_cast %124 : vector<1x16x16xf32> to vector<16x16xf32>
    %cst_62 = arith.constant dense<0.000000e+00> : vector<16x16xf32>
    %126 = tpu.matmul %123, %125, %cst_62 {dimension_numbers = #tpu.dot_dimension_numbers<[1], [0], [0], [1], [0, 0, 1, 1], [], []>} : vector<16x16xf32>, vector<16x16xf32>, vector<16x16xf32> -> vector<16x16xf32>
    %127 = vector.extract_strided_slice %96 {offsets = [0, 0, 0], sizes = [1, 16, 16], strides = [1, 1, 1]} : vector<3x16x16xf32> to vector<1x16x16xf32>
    %128 = vector.shape_cast %127 : vector<1x16x16xf32> to vector<16x16xf32>
    %cst_63 = arith.constant dense<0.000000e+00> : vector<16x16xf32>
    %129 = tpu.matmul %121, %128, %cst_63 {dimension_numbers = #tpu.dot_dimension_numbers<[1], [0], [0], [1], [0, 0, 1, 1], [], []>} : vector<16x16xf32>, vector<16x16xf32>, vector<16x16xf32> -> vector<16x16xf32>
    %130 = arith.addf %126, %129 : vector<16x16xf32>
    %131 = arith.addf %130, %105 : vector<16x16xf32>
    %132 = arith.negf %131 : vector<16x16xf32>
    %133 = math.exp %132 : vector<16x16xf32>
    %cst_64 = arith.constant 1.000000e+00 : f32
    %134 = vector.broadcast %cst_64 : f32 to vector<16x16xf32>
    %135 = arith.addf %134, %133 : vector<16x16xf32>
    %136 = arith.divf %134, %135 : vector<16x16xf32>
    %137 = vector.extract_strided_slice %95 {offsets = [1, 0, 0], sizes = [1, 16, 16], strides = [1, 1, 1]} : vector<3x16x16xf32> to vector<1x16x16xf32>
    %138 = vector.shape_cast %137 : vector<1x16x16xf32> to vector<16x16xf32>
    %cst_65 = arith.constant dense<0.000000e+00> : vector<16x16xf32>
    %139 = tpu.matmul %123, %138, %cst_65 {dimension_numbers = #tpu.dot_dimension_numbers<[1], [0], [0], [1], [0, 0, 1, 1], [], []>} : vector<16x16xf32>, vector<16x16xf32>, vector<16x16xf32> -> vector<16x16xf32>
    %140 = vector.extract_strided_slice %96 {offsets = [1, 0, 0], sizes = [1, 16, 16], strides = [1, 1, 1]} : vector<3x16x16xf32> to vector<1x16x16xf32>
    %141 = vector.shape_cast %140 : vector<1x16x16xf32> to vector<16x16xf32>
    %cst_66 = arith.constant dense<0.000000e+00> : vector<16x16xf32>
    %142 = tpu.matmul %121, %141, %cst_66 {dimension_numbers = #tpu.dot_dimension_numbers<[1], [0], [0], [1], [0, 0, 1, 1], [], []>} : vector<16x16xf32>, vector<16x16xf32>, vector<16x16xf32> -> vector<16x16xf32>
    %143 = arith.addf %139, %142 : vector<16x16xf32>
    %144 = arith.addf %143, %112 : vector<16x16xf32>
    %145 = arith.negf %144 : vector<16x16xf32>
    %146 = math.exp %145 : vector<16x16xf32>
    %cst_67 = arith.constant 1.000000e+00 : f32
    %147 = vector.broadcast %cst_67 : f32 to vector<16x16xf32>
    %148 = arith.addf %147, %146 : vector<16x16xf32>
    %149 = arith.divf %147, %148 : vector<16x16xf32>
    %150 = vector.extract_strided_slice %95 {offsets = [2, 0, 0], sizes = [1, 16, 16], strides = [1, 1, 1]} : vector<3x16x16xf32> to vector<1x16x16xf32>
    %151 = vector.shape_cast %150 : vector<1x16x16xf32> to vector<16x16xf32>
    %cst_68 = arith.constant dense<0.000000e+00> : vector<16x16xf32>
    %152 = tpu.matmul %123, %151, %cst_68 {dimension_numbers = #tpu.dot_dimension_numbers<[1], [0], [0], [1], [0, 0, 1, 1], [], []>} : vector<16x16xf32>, vector<16x16xf32>, vector<16x16xf32> -> vector<16x16xf32>
    %153 = arith.addf %152, %116 : vector<16x16xf32>
    %154 = vector.extract_strided_slice %96 {offsets = [2, 0, 0], sizes = [1, 16, 16], strides = [1, 1, 1]} : vector<3x16x16xf32> to vector<1x16x16xf32>
    %155 = vector.shape_cast %154 : vector<1x16x16xf32> to vector<16x16xf32>
    %cst_69 = arith.constant dense<0.000000e+00> : vector<16x16xf32>
    %156 = tpu.matmul %121, %155, %cst_69 {dimension_numbers = #tpu.dot_dimension_numbers<[1], [0], [0], [1], [0, 0, 1, 1], [], []>} : vector<16x16xf32>, vector<16x16xf32>, vector<16x16xf32> -> vector<16x16xf32>
    %157 = arith.addf %156, %120 : vector<16x16xf32>
    %158 = arith.mulf %136, %157 : vector<16x16xf32>
    %159 = arith.addf %153, %158 : vector<16x16xf32>
    %160 = math.tanh %159 : vector<16x16xf32>
    %cst_70 = arith.constant 1.000000e+00 : f32
    %161 = vector.broadcast %cst_70 : f32 to vector<16x16xf32>
    %162 = arith.subf %161, %149 : vector<16x16xf32>
    %163 = arith.mulf %162, %160 : vector<16x16xf32>
    %164 = arith.mulf %149, %121 : vector<16x16xf32>
    %165 = arith.addf %163, %164 : vector<16x16xf32>
    %166 = vector.extract_strided_slice %94 {offsets = [1, 0, 0], sizes = [1, 16, 16], strides = [1, 1, 1]} : vector<2x16x16xf32> to vector<1x16x16xf32>
    %167 = vector.shape_cast %166 : vector<1x16x16xf32> to vector<16x16xf32>
    %168 = vector.extract_strided_slice %95 {offsets = [0, 0, 0], sizes = [1, 16, 16], strides = [1, 1, 1]} : vector<3x16x16xf32> to vector<1x16x16xf32>
    %169 = vector.shape_cast %168 : vector<1x16x16xf32> to vector<16x16xf32>
    %cst_71 = arith.constant dense<0.000000e+00> : vector<16x16xf32>
    %170 = tpu.matmul %167, %169, %cst_71 {dimension_numbers = #tpu.dot_dimension_numbers<[1], [0], [0], [1], [0, 0, 1, 1], [], []>} : vector<16x16xf32>, vector<16x16xf32>, vector<16x16xf32> -> vector<16x16xf32>
    %171 = vector.extract_strided_slice %96 {offsets = [0, 0, 0], sizes = [1, 16, 16], strides = [1, 1, 1]} : vector<3x16x16xf32> to vector<1x16x16xf32>
    %172 = vector.shape_cast %171 : vector<1x16x16xf32> to vector<16x16xf32>
    %cst_72 = arith.constant dense<0.000000e+00> : vector<16x16xf32>
    %173 = tpu.matmul %165, %172, %cst_72 {dimension_numbers = #tpu.dot_dimension_numbers<[1], [0], [0], [1], [0, 0, 1, 1], [], []>} : vector<16x16xf32>, vector<16x16xf32>, vector<16x16xf32> -> vector<16x16xf32>
    %174 = arith.addf %170, %173 : vector<16x16xf32>
    %175 = arith.addf %174, %105 : vector<16x16xf32>
    %176 = arith.negf %175 : vector<16x16xf32>
    %177 = math.exp %176 : vector<16x16xf32>
    %cst_73 = arith.constant 1.000000e+00 : f32
    %178 = vector.broadcast %cst_73 : f32 to vector<16x16xf32>
    %179 = arith.addf %178, %177 : vector<16x16xf32>
    %180 = arith.divf %178, %179 : vector<16x16xf32>
    %181 = vector.extract_strided_slice %95 {offsets = [1, 0, 0], sizes = [1, 16, 16], strides = [1, 1, 1]} : vector<3x16x16xf32> to vector<1x16x16xf32>
    %182 = vector.shape_cast %181 : vector<1x16x16xf32> to vector<16x16xf32>
    %cst_74 = arith.constant dense<0.000000e+00> : vector<16x16xf32>
    %183 = tpu.matmul %167, %182, %cst_74 {dimension_numbers = #tpu.dot_dimension_numbers<[1], [0], [0], [1], [0, 0, 1, 1], [], []>} : vector<16x16xf32>, vector<16x16xf32>, vector<16x16xf32> -> vector<16x16xf32>
    %184 = vector.extract_strided_slice %96 {offsets = [1, 0, 0], sizes = [1, 16, 16], strides = [1, 1, 1]} : vector<3x16x16xf32> to vector<1x16x16xf32>
    %185 = vector.shape_cast %184 : vector<1x16x16xf32> to vector<16x16xf32>
    %cst_75 = arith.constant dense<0.000000e+00> : vector<16x16xf32>
    %186 = tpu.matmul %165, %185, %cst_75 {dimension_numbers = #tpu.dot_dimension_numbers<[1], [0], [0], [1], [0, 0, 1, 1], [], []>} : vector<16x16xf32>, vector<16x16xf32>, vector<16x16xf32> -> vector<16x16xf32>
    %187 = arith.addf %183, %186 : vector<16x16xf32>
    %188 = arith.addf %187, %112 : vector<16x16xf32>
    %189 = arith.negf %188 : vector<16x16xf32>
    %190 = math.exp %189 : vector<16x16xf32>
    %cst_76 = arith.constant 1.000000e+00 : f32
    %191 = vector.broadcast %cst_76 : f32 to vector<16x16xf32>
    %192 = arith.addf %191, %190 : vector<16x16xf32>
    %193 = arith.divf %191, %192 : vector<16x16xf32>
    %194 = vector.extract_strided_slice %95 {offsets = [2, 0, 0], sizes = [1, 16, 16], strides = [1, 1, 1]} : vector<3x16x16xf32> to vector<1x16x16xf32>
    %195 = vector.shape_cast %194 : vector<1x16x16xf32> to vector<16x16xf32>
    %cst_77 = arith.constant dense<0.000000e+00> : vector<16x16xf32>
    %196 = tpu.matmul %167, %195, %cst_77 {dimension_numbers = #tpu.dot_dimension_numbers<[1], [0], [0], [1], [0, 0, 1, 1], [], []>} : vector<16x16xf32>, vector<16x16xf32>, vector<16x16xf32> -> vector<16x16xf32>
    %197 = arith.addf %196, %116 : vector<16x16xf32>
    %198 = vector.extract_strided_slice %96 {offsets = [2, 0, 0], sizes = [1, 16, 16], strides = [1, 1, 1]} : vector<3x16x16xf32> to vector<1x16x16xf32>
    %199 = vector.shape_cast %198 : vector<1x16x16xf32> to vector<16x16xf32>
    %cst_78 = arith.constant dense<0.000000e+00> : vector<16x16xf32>
    %200 = tpu.matmul %165, %199, %cst_78 {dimension_numbers = #tpu.dot_dimension_numbers<[1], [0], [0], [1], [0, 0, 1, 1], [], []>} : vector<16x16xf32>, vector<16x16xf32>, vector<16x16xf32> -> vector<16x16xf32>
    %201 = arith.addf %200, %120 : vector<16x16xf32>
    %202 = arith.mulf %180, %201 : vector<16x16xf32>
    %203 = arith.addf %197, %202 : vector<16x16xf32>
    %204 = math.tanh %203 : vector<16x16xf32>
    %cst_79 = arith.constant 1.000000e+00 : f32
    %205 = vector.broadcast %cst_79 : f32 to vector<16x16xf32>
    %206 = arith.subf %205, %193 : vector<16x16xf32>
    %207 = arith.mulf %206, %204 : vector<16x16xf32>
    %208 = arith.mulf %193, %165 : vector<16x16xf32>
    %209 = arith.addf %207, %208 : vector<16x16xf32>
    %c0_80 = arith.constant 0 : index
    %c0_81 = arith.constant 0 : index
    %c0_82 = arith.constant 0 : index
    %210 = vector.load %arg15[%c0_80, %c0_81, %c0_82] : memref<3x16x16xf32, #tpu.memory_space<vmem>>, vector<3x16x16xf32>
    %c0_83 = arith.constant 0 : index
    %c0_84 = arith.constant 0 : index
    %c0_85 = arith.constant 0 : index
    %211 = vector.load %arg16[%c0_83, %c0_84, %c0_85] : memref<3x16x16xf32, #tpu.memory_space<vmem>>, vector<3x16x16xf32>
    %c0_86 = arith.constant 0 : index
    %c0_87 = arith.constant 0 : index
    %c0_88 = arith.constant 0 : index
    %212 = vector.load %arg17[%c0_86, %c0_87, %c0_88] : memref<3x1x16xf32, #tpu.memory_space<vmem>>, vector<3x1x16xf32>
    %c0_89 = arith.constant 0 : index
    %c0_90 = arith.constant 0 : index
    %c0_91 = arith.constant 0 : index
    %213 = vector.load %arg18[%c0_89, %c0_90, %c0_91] : memref<3x1x16xf32, #tpu.memory_space<vmem>>, vector<3x1x16xf32>
    %214 = vector.extract_strided_slice %212 {offsets = [0, 0, 0], sizes = [1, 1, 16], strides = [1, 1, 1]} : vector<3x1x16xf32> to vector<1x1x16xf32>
    %215 = vector.shape_cast %214 : vector<1x1x16xf32> to vector<1x16xf32>
    %216 = vector.extract_strided_slice %213 {offsets = [0, 0, 0], sizes = [1, 1, 16], strides = [1, 1, 1]} : vector<3x1x16xf32> to vector<1x1x16xf32>
    %217 = vector.shape_cast %216 : vector<1x1x16xf32> to vector<1x16xf32>
    %218 = arith.addf %215, %217 : vector<1x16xf32>
    %219 = vector.shape_cast %218 : vector<1x16xf32> to vector<1x16xf32>
    %220 = vector.broadcast %219 : vector<1x16xf32> to vector<16x16xf32>
    %221 = vector.extract_strided_slice %212 {offsets = [1, 0, 0], sizes = [1, 1, 16], strides = [1, 1, 1]} : vector<3x1x16xf32> to vector<1x1x16xf32>
    %222 = vector.shape_cast %221 : vector<1x1x16xf32> to vector<1x16xf32>
    %223 = vector.extract_strided_slice %213 {offsets = [1, 0, 0], sizes = [1, 1, 16], strides = [1, 1, 1]} : vector<3x1x16xf32> to vector<1x1x16xf32>
    %224 = vector.shape_cast %223 : vector<1x1x16xf32> to vector<1x16xf32>
    %225 = arith.addf %222, %224 : vector<1x16xf32>
    %226 = vector.shape_cast %225 : vector<1x16xf32> to vector<1x16xf32>
    %227 = vector.broadcast %226 : vector<1x16xf32> to vector<16x16xf32>
    %228 = vector.extract_strided_slice %212 {offsets = [2, 0, 0], sizes = [1, 1, 16], strides = [1, 1, 1]} : vector<3x1x16xf32> to vector<1x1x16xf32>
    %229 = vector.shape_cast %228 : vector<1x1x16xf32> to vector<1x16xf32>
    %230 = vector.shape_cast %229 : vector<1x16xf32> to vector<1x16xf32>
    %231 = vector.broadcast %230 : vector<1x16xf32> to vector<16x16xf32>
    %232 = vector.extract_strided_slice %213 {offsets = [2, 0, 0], sizes = [1, 1, 16], strides = [1, 1, 1]} : vector<3x1x16xf32> to vector<1x1x16xf32>
    %233 = vector.shape_cast %232 : vector<1x1x16xf32> to vector<1x16xf32>
    %234 = vector.shape_cast %233 : vector<1x16xf32> to vector<1x16xf32>
    %235 = vector.broadcast %234 : vector<1x16xf32> to vector<16x16xf32>
    %cst_92 = arith.constant 0.000000e+00 : f32
    %236 = vector.broadcast %cst_92 : f32 to vector<16x16xf32>
    %237 = vector.extract_strided_slice %94 {offsets = [1, 0, 0], sizes = [1, 16, 16], strides = [1, 1, 1]} : vector<2x16x16xf32> to vector<1x16x16xf32>
    %238 = vector.shape_cast %237 : vector<1x16x16xf32> to vector<16x16xf32>
    %239 = vector.extract_strided_slice %210 {offsets = [0, 0, 0], sizes = [1, 16, 16], strides = [1, 1, 1]} : vector<3x16x16xf32> to vector<1x16x16xf32>
    %240 = vector.shape_cast %239 : vector<1x16x16xf32> to vector<16x16xf32>
    %cst_93 = arith.constant dense<0.000000e+00> : vector<16x16xf32>
    %241 = tpu.matmul %238, %240, %cst_93 {dimension_numbers = #tpu.dot_dimension_numbers<[1], [0], [0], [1], [0, 0, 1, 1], [], []>} : vector<16x16xf32>, vector<16x16xf32>, vector<16x16xf32> -> vector<16x16xf32>
    %242 = vector.extract_strided_slice %211 {offsets = [0, 0, 0], sizes = [1, 16, 16], strides = [1, 1, 1]} : vector<3x16x16xf32> to vector<1x16x16xf32>
    %243 = vector.shape_cast %242 : vector<1x16x16xf32> to vector<16x16xf32>
    %cst_94 = arith.constant dense<0.000000e+00> : vector<16x16xf32>
    %244 = tpu.matmul %236, %243, %cst_94 {dimension_numbers = #tpu.dot_dimension_numbers<[1], [0], [0], [1], [0, 0, 1, 1], [], []>} : vector<16x16xf32>, vector<16x16xf32>, vector<16x16xf32> -> vector<16x16xf32>
    %245 = arith.addf %241, %244 : vector<16x16xf32>
    %246 = arith.addf %245, %220 : vector<16x16xf32>
    %247 = arith.negf %246 : vector<16x16xf32>
    %248 = math.exp %247 : vector<16x16xf32>
    %cst_95 = arith.constant 1.000000e+00 : f32
    %249 = vector.broadcast %cst_95 : f32 to vector<16x16xf32>
    %250 = arith.addf %249, %248 : vector<16x16xf32>
    %251 = arith.divf %249, %250 : vector<16x16xf32>
    %252 = vector.extract_strided_slice %210 {offsets = [1, 0, 0], sizes = [1, 16, 16], strides = [1, 1, 1]} : vector<3x16x16xf32> to vector<1x16x16xf32>
    %253 = vector.shape_cast %252 : vector<1x16x16xf32> to vector<16x16xf32>
    %cst_96 = arith.constant dense<0.000000e+00> : vector<16x16xf32>
    %254 = tpu.matmul %238, %253, %cst_96 {dimension_numbers = #tpu.dot_dimension_numbers<[1], [0], [0], [1], [0, 0, 1, 1], [], []>} : vector<16x16xf32>, vector<16x16xf32>, vector<16x16xf32> -> vector<16x16xf32>
    %255 = vector.extract_strided_slice %211 {offsets = [1, 0, 0], sizes = [1, 16, 16], strides = [1, 1, 1]} : vector<3x16x16xf32> to vector<1x16x16xf32>
    %256 = vector.shape_cast %255 : vector<1x16x16xf32> to vector<16x16xf32>
    %cst_97 = arith.constant dense<0.000000e+00> : vector<16x16xf32>
    %257 = tpu.matmul %236, %256, %cst_97 {dimension_numbers = #tpu.dot_dimension_numbers<[1], [0], [0], [1], [0, 0, 1, 1], [], []>} : vector<16x16xf32>, vector<16x16xf32>, vector<16x16xf32> -> vector<16x16xf32>
    %258 = arith.addf %254, %257 : vector<16x16xf32>
    %259 = arith.addf %258, %227 : vector<16x16xf32>
    %260 = arith.negf %259 : vector<16x16xf32>
    %261 = math.exp %260 : vector<16x16xf32>
    %cst_98 = arith.constant 1.000000e+00 : f32
    %262 = vector.broadcast %cst_98 : f32 to vector<16x16xf32>
    %263 = arith.addf %262, %261 : vector<16x16xf32>
    %264 = arith.divf %262, %263 : vector<16x16xf32>
    %265 = vector.extract_strided_slice %210 {offsets = [2, 0, 0], sizes = [1, 16, 16], strides = [1, 1, 1]} : vector<3x16x16xf32> to vector<1x16x16xf32>
    %266 = vector.shape_cast %265 : vector<1x16x16xf32> to vector<16x16xf32>
    %cst_99 = arith.constant dense<0.000000e+00> : vector<16x16xf32>
    %267 = tpu.matmul %238, %266, %cst_99 {dimension_numbers = #tpu.dot_dimension_numbers<[1], [0], [0], [1], [0, 0, 1, 1], [], []>} : vector<16x16xf32>, vector<16x16xf32>, vector<16x16xf32> -> vector<16x16xf32>
    %268 = arith.addf %267, %231 : vector<16x16xf32>
    %269 = vector.extract_strided_slice %211 {offsets = [2, 0, 0], sizes = [1, 16, 16], strides = [1, 1, 1]} : vector<3x16x16xf32> to vector<1x16x16xf32>
    %270 = vector.shape_cast %269 : vector<1x16x16xf32> to vector<16x16xf32>
    %cst_100 = arith.constant dense<0.000000e+00> : vector<16x16xf32>
    %271 = tpu.matmul %236, %270, %cst_100 {dimension_numbers = #tpu.dot_dimension_numbers<[1], [0], [0], [1], [0, 0, 1, 1], [], []>} : vector<16x16xf32>, vector<16x16xf32>, vector<16x16xf32> -> vector<16x16xf32>
    %272 = arith.addf %271, %235 : vector<16x16xf32>
    %273 = arith.mulf %251, %272 : vector<16x16xf32>
    %274 = arith.addf %268, %273 : vector<16x16xf32>
    %275 = math.tanh %274 : vector<16x16xf32>
    %cst_101 = arith.constant 1.000000e+00 : f32
    %276 = vector.broadcast %cst_101 : f32 to vector<16x16xf32>
    %277 = arith.subf %276, %264 : vector<16x16xf32>
    %278 = arith.mulf %277, %275 : vector<16x16xf32>
    %279 = arith.mulf %264, %236 : vector<16x16xf32>
    %280 = arith.addf %278, %279 : vector<16x16xf32>
    %281 = vector.extract_strided_slice %94 {offsets = [0, 0, 0], sizes = [1, 16, 16], strides = [1, 1, 1]} : vector<2x16x16xf32> to vector<1x16x16xf32>
    %282 = vector.shape_cast %281 : vector<1x16x16xf32> to vector<16x16xf32>
    %283 = vector.extract_strided_slice %210 {offsets = [0, 0, 0], sizes = [1, 16, 16], strides = [1, 1, 1]} : vector<3x16x16xf32> to vector<1x16x16xf32>
    %284 = vector.shape_cast %283 : vector<1x16x16xf32> to vector<16x16xf32>
    %cst_102 = arith.constant dense<0.000000e+00> : vector<16x16xf32>
    %285 = tpu.matmul %282, %284, %cst_102 {dimension_numbers = #tpu.dot_dimension_numbers<[1], [0], [0], [1], [0, 0, 1, 1], [], []>} : vector<16x16xf32>, vector<16x16xf32>, vector<16x16xf32> -> vector<16x16xf32>
    %286 = vector.extract_strided_slice %211 {offsets = [0, 0, 0], sizes = [1, 16, 16], strides = [1, 1, 1]} : vector<3x16x16xf32> to vector<1x16x16xf32>
    %287 = vector.shape_cast %286 : vector<1x16x16xf32> to vector<16x16xf32>
    %cst_103 = arith.constant dense<0.000000e+00> : vector<16x16xf32>
    %288 = tpu.matmul %280, %287, %cst_103 {dimension_numbers = #tpu.dot_dimension_numbers<[1], [0], [0], [1], [0, 0, 1, 1], [], []>} : vector<16x16xf32>, vector<16x16xf32>, vector<16x16xf32> -> vector<16x16xf32>
    %289 = arith.addf %285, %288 : vector<16x16xf32>
    %290 = arith.addf %289, %220 : vector<16x16xf32>
    %291 = arith.negf %290 : vector<16x16xf32>
    %292 = math.exp %291 : vector<16x16xf32>
    %cst_104 = arith.constant 1.000000e+00 : f32
    %293 = vector.broadcast %cst_104 : f32 to vector<16x16xf32>
    %294 = arith.addf %293, %292 : vector<16x16xf32>
    %295 = arith.divf %293, %294 : vector<16x16xf32>
    %296 = vector.extract_strided_slice %210 {offsets = [1, 0, 0], sizes = [1, 16, 16], strides = [1, 1, 1]} : vector<3x16x16xf32> to vector<1x16x16xf32>
    %297 = vector.shape_cast %296 : vector<1x16x16xf32> to vector<16x16xf32>
    %cst_105 = arith.constant dense<0.000000e+00> : vector<16x16xf32>
    %298 = tpu.matmul %282, %297, %cst_105 {dimension_numbers = #tpu.dot_dimension_numbers<[1], [0], [0], [1], [0, 0, 1, 1], [], []>} : vector<16x16xf32>, vector<16x16xf32>, vector<16x16xf32> -> vector<16x16xf32>
    %299 = vector.extract_strided_slice %211 {offsets = [1, 0, 0], sizes = [1, 16, 16], strides = [1, 1, 1]} : vector<3x16x16xf32> to vector<1x16x16xf32>
    %300 = vector.shape_cast %299 : vector<1x16x16xf32> to vector<16x16xf32>
    %cst_106 = arith.constant dense<0.000000e+00> : vector<16x16xf32>
    %301 = tpu.matmul %280, %300, %cst_106 {dimension_numbers = #tpu.dot_dimension_numbers<[1], [0], [0], [1], [0, 0, 1, 1], [], []>} : vector<16x16xf32>, vector<16x16xf32>, vector<16x16xf32> -> vector<16x16xf32>
    %302 = arith.addf %298, %301 : vector<16x16xf32>
    %303 = arith.addf %302, %227 : vector<16x16xf32>
    %304 = arith.negf %303 : vector<16x16xf32>
    %305 = math.exp %304 : vector<16x16xf32>
    %cst_107 = arith.constant 1.000000e+00 : f32
    %306 = vector.broadcast %cst_107 : f32 to vector<16x16xf32>
    %307 = arith.addf %306, %305 : vector<16x16xf32>
    %308 = arith.divf %306, %307 : vector<16x16xf32>
    %309 = vector.extract_strided_slice %210 {offsets = [2, 0, 0], sizes = [1, 16, 16], strides = [1, 1, 1]} : vector<3x16x16xf32> to vector<1x16x16xf32>
    %310 = vector.shape_cast %309 : vector<1x16x16xf32> to vector<16x16xf32>
    %cst_108 = arith.constant dense<0.000000e+00> : vector<16x16xf32>
    %311 = tpu.matmul %282, %310, %cst_108 {dimension_numbers = #tpu.dot_dimension_numbers<[1], [0], [0], [1], [0, 0, 1, 1], [], []>} : vector<16x16xf32>, vector<16x16xf32>, vector<16x16xf32> -> vector<16x16xf32>
    %312 = arith.addf %311, %231 : vector<16x16xf32>
    %313 = vector.extract_strided_slice %211 {offsets = [2, 0, 0], sizes = [1, 16, 16], strides = [1, 1, 1]} : vector<3x16x16xf32> to vector<1x16x16xf32>
    %314 = vector.shape_cast %313 : vector<1x16x16xf32> to vector<16x16xf32>
    %cst_109 = arith.constant dense<0.000000e+00> : vector<16x16xf32>
    %315 = tpu.matmul %280, %314, %cst_109 {dimension_numbers = #tpu.dot_dimension_numbers<[1], [0], [0], [1], [0, 0, 1, 1], [], []>} : vector<16x16xf32>, vector<16x16xf32>, vector<16x16xf32> -> vector<16x16xf32>
    %316 = arith.addf %315, %235 : vector<16x16xf32>
    %317 = arith.mulf %295, %316 : vector<16x16xf32>
    %318 = arith.addf %312, %317 : vector<16x16xf32>
    %319 = math.tanh %318 : vector<16x16xf32>
    %cst_110 = arith.constant 1.000000e+00 : f32
    %320 = vector.broadcast %cst_110 : f32 to vector<16x16xf32>
    %321 = arith.subf %320, %308 : vector<16x16xf32>
    %322 = arith.mulf %321, %319 : vector<16x16xf32>
    %323 = arith.mulf %308, %280 : vector<16x16xf32>
    %324 = arith.addf %322, %323 : vector<16x16xf32>
    %325 = tpu.concatenate %165, %324 in 1 : vector<16x16xf32>, vector<16x16xf32> -> vector<16x32xf32>
    %326 = tpu.concatenate %209, %280 in 1 : vector<16x16xf32>, vector<16x16xf32> -> vector<16x32xf32>
    %327 = vector.shape_cast %325 : vector<16x32xf32> to vector<1x16x32xf32>
    %328 = vector.shape_cast %326 : vector<16x32xf32> to vector<1x16x32xf32>
    %329 = tpu.concatenate %327, %328 in 0 : vector<1x16x32xf32>, vector<1x16x32xf32> -> vector<2x16x32xf32>
    %c0_111 = arith.constant 0 : index
    %c0_112 = arith.constant 0 : index
    %c0_113 = arith.constant 0 : index
    %330 = vector.load %arg19[%c0_111, %c0_112, %c0_113] : memref<2x16x32xf32, #tpu.memory_space<vmem>>, vector<2x16x32xf32>
    tpu.vector_store %arg19[%c0_111, %c0_112, %c0_113], %329 {strides = array<i32>} : memref<2x16x32xf32, #tpu.memory_space<vmem>>, vector<2x16x32xf32>,
    %331 = vector.shape_cast %209 : vector<16x16xf32> to vector<1x16x16xf32>
    %332 = vector.shape_cast %324 : vector<16x16xf32> to vector<1x16x16xf32>
    %333 = tpu.concatenate %331, %332 in 0 : vector<1x16x16xf32>, vector<1x16x16xf32> -> vector<2x16x16xf32>
    %c0_114 = arith.constant 0 : index
    %c0_115 = arith.constant 0 : index
    %c0_116 = arith.constant 0 : index
    %334 = vector.load %arg20[%c0_114, %c0_115, %c0_116] : memref<2x16x16xf32, #tpu.memory_space<vmem>>, vector<2x16x16xf32>
    tpu.vector_store %arg20[%c0_114, %c0_115, %c0_116], %333 {strides = array<i32>} : memref<2x16x16xf32, #tpu.memory_space<vmem>>, vector<2x16x16xf32>,
    return
  }
}

</mosaic_0001>

<llo_original>
// kernel: forward.1
$region0: #{forward.1}
  #allocation0 [shape = 'u32[]', space=smem, size = 0x4, offset = 0x4, fixed_abs, tag = 'smem constant byte address 0x4 - core index']
  #allocation1 [shape = 'u32[72,128]{1,0:T(1,128)}', space=vmem, size = 0x9000, scoped, tag = 'internal scratch']
  #allocation2 [shape = 'f32[2,18,32]{2,1,0:T(8,128)}', space=vmem, size = 0x6000, scoped, tag = 'scratch operand']
  %s0 = inlined_call_operand.vmem [shape: f32[2,18,16], index: 0, kind: input, shape index: {}]
  %s1 = inlined_call_operand.hbm [shape: f32[48,32], index: 1, kind: input, shape index: {}]
  %s2 = inlined_call_operand.hbm [shape: f32[1,32], index: 2, kind: input, shape index: {}]
  %s3 = inlined_call_operand.vmem [shape: f32[96,32], index: 3, kind: input, shape index: {}]
  %s4 = inlined_call_operand.hbm [shape: f32[1,32], index: 4, kind: input, shape index: {}]
  %s5 = inlined_call_operand.hbm [shape: f32[32,16], index: 5, kind: input, shape index: {}]
  %s6 = inlined_call_operand.hbm [shape: f32[1,16], index: 6, kind: input, shape index: {}]
  %s7 = inlined_call_operand.hbm [shape: f32[2,16,16], index: 7, kind: input, shape index: {}]
  %s8 = inlined_call_operand.hbm [shape: f32[2,1,16], index: 8, kind: input, shape index: {}]
  %s9 = inlined_call_operand.hbm [shape: f32[2,16,16], index: 9, kind: input, shape index: {}]
  %s10 = inlined_call_operand.hbm [shape: f32[2,1,16], index: 10, kind: input, shape index: {}]
  %s11 = inlined_call_operand.hbm [shape: f32[3,16,16], index: 11, kind: input, shape index: {}]
  %s12 = inlined_call_operand.hbm [shape: f32[3,16,16], index: 12, kind: input, shape index: {}]
  %s13 = inlined_call_operand.vmem [shape: f32[3,1,16], index: 13, kind: input, shape index: {}]
  %s14 = inlined_call_operand.vmem [shape: f32[3,1,16], index: 14, kind: input, shape index: {}]
  %s15 = inlined_call_operand.hbm [shape: f32[3,16,16], index: 15, kind: input, shape index: {}]
  %s16 = inlined_call_operand.vmem [shape: f32[3,16,16], index: 16, kind: input, shape index: {}]
  %s17 = inlined_call_operand.vmem [shape: f32[3,1,16], index: 17, kind: input, shape index: {}]
  %s18 = inlined_call_operand.vmem [shape: f32[3,1,16], index: 18, kind: input, shape index: {}]
  %s19 = inlined_call_operand.hbm [shape: f32[2,16,32], index: 19, kind: output, shape index: {0}]
  %s20 = inlined_call_operand.hbm [shape: f32[2,16,16], index: 20, kind: output, shape index: {1}]
  %21 = xla_tuple %s19, %s20
  %s22 = sld [smem:[#allocation0]]
  $region142: #{forward.1} parent=0
    _
  %s24 = ssub.s32 1, %s22
  %s25 = scalar_select 0, %s24, %s22
  $region1: #{forward.1} parent=0
    #allocation3 [shape = 'u8[24576]{0}', space=vmem, size = 0x6000, scoped, tag = 'input window, operand 1, single buffered']
    #allocation4 [shape = 's32[1]{0}', space=sflag, size = 0x4, scoped, tag = 'scoped memory for forward.1']
    #allocation5 [shape = 's32[1]{0}', space=sflag, size = 0x4, scoped, tag = 'scoped memory for forward.1']
    #allocation6 [shape = 'u8[512]{0}', space=vmem, size = 0x400, scoped, tag = 'input window, operand 2, single buffered']
    #allocation7 [shape = 's32[1]{0}', space=sflag, size = 0x4, scoped, tag = 'scoped memory for forward.1']
    #allocation8 [shape = 'u8[512]{0}', space=vmem, size = 0x400, scoped, tag = 'input window, operand 4, single buffered']
    #allocation9 [shape = 'u8[16384]{0}', space=vmem, size = 0x4000, scoped, tag = 'input window, operand 5, single buffered']
    #allocation10 [shape = 's32[1]{0}', space=sflag, size = 0x4, scoped, tag = 'scoped memory for forward.1']
    #allocation11 [shape = 'u8[512]{0}', space=vmem, size = 0x400, scoped, tag = 'input window, operand 6, single buffered']
    #allocation12 [shape = 'u8[16384]{0}', space=vmem, size = 0x4000, scoped, tag = 'input window, operand 7, single buffered']
    #allocation13 [shape = 's32[1]{0}', space=sflag, size = 0x4, scoped, tag = 'scoped memory for forward.1']
    #allocation14 [shape = 'u8[1024]{0}', space=vmem, size = 0x400, scoped, tag = 'input window, operand 8, single buffered']
    #allocation15 [shape = 'u8[16384]{0}', space=vmem, size = 0x4000, scoped, tag = 'input window, operand 9, single buffered']
    #allocation16 [shape = 's32[1]{0}', space=sflag, size = 0x4, scoped, tag = 'scoped memory for forward.1']
    #allocation17 [shape = 'u8[1024]{0}', space=vmem, size = 0x400, scoped, tag = 'input window, operand 10, single buffered']
    #allocation18 [shape = 'u8[24576]{0}', space=vmem, size = 0x6000, scoped, tag = 'input window, operand 11, single buffered']
    #allocation19 [shape = 's32[1]{0}', space=sflag, size = 0x4, scoped, tag = 'scoped memory for forward.1']
    #allocation20 [shape = 'u8[24576]{0}', space=vmem, size = 0x6000, scoped, tag = 'input window, operand 12, single buffered']
    #allocation21 [shape = 'u8[24576]{0}', space=vmem, size = 0x6000, scoped, tag = 'input window, operand 15, single buffered']
    #allocation22 [shape = 's32[1]{0}', space=sflag, size = 0x4, scoped, tag = 'scoped memory for forward.1']
    #allocation23 [shape = 'u8[16384]{0}', space=vmem, size = 0x4000, scoped, tag = 'output window, operand 0, single buffered']
    #allocation24 [shape = 'u8[16384]{0}', space=vmem, size = 0x4000, scoped, tag = 'output window, operand 1, single buffered']
    #allocation25 [shape = 's32[1]{0}', space=sflag, size = 0x4, scoped, tag = 'scoped memory for forward.1']
    %26 = vsyncpa [#allocation4], 0
    %27 = vsyncpa [#allocation7], 0
    %28 = vsyncpa [#allocation10], 0
    %29 = vsyncpa [#allocation13], 0
    %30 = vsyncpa [#allocation16], 0
    %31 = vsyncpa [#allocation19], 0
    %32 = vsyncpa [#allocation22], 0
    %33 = vsyncpa [#allocation5], 0
    %34 = vsyncpa [#allocation25], 0
    // Predicated region
    $region2: #{forward.1} parent=1 // pred_check
      _
    $region3: #{forward.1} parent=1 // pred_check_branch
      %36 = sbr.rel (0) target = $region5
    $region4: #{forward.1} parent=1 // pred_region
      _
    $region5: #{forward.1} parent=1 // pred_fallthru
      _
    // Predicated region
    $region6: #{forward.1} parent=1 // pred_check
      _
    $region7: #{forward.1} parent=1 // pred_check_branch
      %38 = sbr.rel (0) target = $region9
    $region8: #{forward.1} parent=1 // pred_region
      %40 = vsyncadd [#allocation4], 0
      %s41 = sshll.u32 %s1, 4
      %s42 = int_to_ptr.hbm [resolvable:$true] %s41
      %s43 = sshll.u32 [#allocation3], 4
      %s44 = int_to_ptr.vmem [resolvable:$true] %s43
      %49 = dma.hbm_to_vmem [thread:$0]  %s42, 768, %s44, [#allocation4], 128, 128, 8
    $region9: #{forward.1} parent=1 // pred_fallthru
      _
    // Predicated region
    $region10: #{forward.1} parent=1 // pred_check
      _
    $region11: #{forward.1} parent=1 // pred_check_branch
      %51 = sbr.rel (0) target = $region13
    $region12: #{forward.1} parent=1 // pred_region
      %53 = vsyncadd [#allocation7], 0
      %s55 = sshll.u32 %s2, 4
      %s56 = int_to_ptr.hbm [resolvable:$true] %s55
      %s57 = sshll.u32 [#allocation6], 4
      %s58 = int_to_ptr.vmem [resolvable:$true] %s57
      %60 = dma.hbm_to_vmem [thread:$0]  %s56, 16, %s58, [#allocation7]
    $region13: #{forward.1} parent=1 // pred_fallthru
      _
    // Predicated region
    $region14: #{forward.1} parent=1 // pred_check
      _
    $region15: #{forward.1} parent=1 // pred_check_branch
      %62 = sbr.rel (0) target = $region17
    $region16: #{forward.1} parent=1 // pred_region
      _
    $region17: #{forward.1} parent=1 // pred_fallthru
      _
    // Predicated region
    $region18: #{forward.1} parent=1 // pred_check
      _
    $region19: #{forward.1} parent=1 // pred_check_branch
      %64 = sbr.rel (0) target = $region21
    $region20: #{forward.1} parent=1 // pred_region
      %66 = vsyncadd [#allocation7], 0
      %s68 = sshll.u32 %s4, 4
      %s69 = int_to_ptr.hbm [resolvable:$true] %s68
      %s70 = sshll.u32 [#allocation8], 4
      %s71 = int_to_ptr.vmem [resolvable:$true] %s70
      %73 = dma.hbm_to_vmem [thread:$0]  %s69, 16, %s71, [#allocation7]
    $region21: #{forward.1} parent=1 // pred_fallthru
      _
    // Predicated region
    $region22: #{forward.1} parent=1 // pred_check
      _
    $region23: #{forward.1} parent=1 // pred_check_branch
      %75 = sbr.rel (0) target = $region25
    $region24: #{forward.1} parent=1 // pred_region
      %77 = vsyncadd [#allocation10], 0
      %s78 = sshll.u32 %s5, 4
      %s79 = int_to_ptr.hbm [resolvable:$true] %s78
      %s80 = sshll.u32 [#allocation9], 4
      %s81 = int_to_ptr.vmem [resolvable:$true] %s80
      %86 = dma.hbm_to_vmem [thread:$0]  %s79, 512, %s81, [#allocation10], 128, 128, 8
    $region25: #{forward.1} parent=1 // pred_fallthru
      _
    // Predicated region
    $region26: #{forward.1} parent=1 // pred_check
      _
    $region27: #{forward.1} parent=1 // pred_check_branch
      %88 = sbr.rel (0) target = $region29
    $region28: #{forward.1} parent=1 // pred_region
      %90 = vsyncadd [#allocation10], 0
      %s92 = sshll.u32 %s6, 4
      %s93 = int_to_ptr.hbm [resolvable:$true] %s92
      %s94 = sshll.u32 [#allocation11], 4
      %s95 = int_to_ptr.vmem [resolvable:$true] %s94
      %97 = dma.hbm_to_vmem [thread:$0]  %s93, 16, %s95, [#allocation10]
    $region29: #{forward.1} parent=1 // pred_fallthru
      _
    // Predicated region
    $region30: #{forward.1} parent=1 // pred_check
      _
    $region31: #{forward.1} parent=1 // pred_check_branch
      %99 = sbr.rel (0) target = $region33
    $region32: #{forward.1} parent=1 // pred_region
      %101 = vsyncadd [#allocation13], 0
      %s102 = sshll.u32 %s7, 4
      %s103 = int_to_ptr.hbm [resolvable:$true] %s102
      %s104 = sshll.u32 [#allocation12], 4
      %s105 = int_to_ptr.vmem [resolvable:$true] %s104
      %110 = dma.hbm_to_vmem [thread:$0]  %s103, 512, %s105, [#allocation13], 128, 128, 8
    $region33: #{forward.1} parent=1 // pred_fallthru
      _
    // Predicated region
    $region34: #{forward.1} parent=1 // pred_check
      _
    $region35: #{forward.1} parent=1 // pred_check_branch
      %112 = sbr.rel (0) target = $region37
    $region36: #{forward.1} parent=1 // pred_region
      %114 = vsyncadd [#allocation13], 0
      %s115 = sshll.u32 %s8, 4
      %s116 = int_to_ptr.hbm [resolvable:$true] %s115
      %s117 = sshll.u32 [#allocation14], 4
      %s118 = int_to_ptr.vmem [resolvable:$true] %s117
      %123 = dma.hbm_to_vmem [thread:$0]  %s116, 32, %s118, [#allocation13], 16, 16, 1
    $region37: #{forward.1} parent=1 // pred_fallthru
      _
    // Predicated region
    $region38: #{forward.1} parent=1 // pred_check
      _
    $region39: #{forward.1} parent=1 // pred_check_branch
      %125 = sbr.rel (0) target = $region41
    $region40: #{forward.1} parent=1 // pred_region
      %127 = vsyncadd [#allocation16], 0
      %s128 = sshll.u32 %s9, 4
      %s129 = int_to_ptr.hbm [resolvable:$true] %s128
      %s130 = sshll.u32 [#allocation15], 4
      %s131 = int_to_ptr.vmem [resolvable:$true] %s130
      %136 = dma.hbm_to_vmem [thread:$0]  %s129, 512, %s131, [#allocation16], 128, 128, 8
    $region41: #{forward.1} parent=1 // pred_fallthru
      _
    // Predicated region
    $region42: #{forward.1} parent=1 // pred_check
      _
    $region43: #{forward.1} parent=1 // pred_check_branch
      %138 = sbr.rel (0) target = $region45
    $region44: #{forward.1} parent=1 // pred_region
      %140 = vsyncadd [#allocation16], 0
      %s141 = sshll.u32 %s10, 4
      %s142 = int_to_ptr.hbm [resolvable:$true] %s141
      %s143 = sshll.u32 [#allocation17], 4
      %s144 = int_to_ptr.vmem [resolvable:$true] %s143
      %149 = dma.hbm_to_vmem [thread:$0]  %s142, 32, %s144, [#allocation16], 16, 16, 1
    $region45: #{forward.1} parent=1 // pred_fallthru
      _
    // Predicated region
    $region46: #{forward.1} parent=1 // pred_check
      _
    $region47: #{forward.1} parent=1 // pred_check_branch
      %151 = sbr.rel (0) target = $region49
    $region48: #{forward.1} parent=1 // pred_region
      %153 = vsyncadd [#allocation19], 0
      %s154 = sshll.u32 %s11, 4
      %s155 = int_to_ptr.hbm [resolvable:$true] %s154
      %s156 = sshll.u32 [#allocation18], 4
      %s157 = int_to_ptr.vmem [resolvable:$true] %s156
      %162 = dma.hbm_to_vmem [thread:$0]  %s155, 768, %s157, [#allocation19], 128, 128, 8
    $region49: #{forward.1} parent=1 // pred_fallthru
      _
    // Predicated region
    $region50: #{forward.1} parent=1 // pred_check
      _
    $region51: #{forward.1} parent=1 // pred_check_branch
      %164 = sbr.rel (0) target = $region53
    $region52: #{forward.1} parent=1 // pred_region
      %166 = vsyncadd [#allocation19], 0
      %s167 = sshll.u32 %s12, 4
      %s168 = int_to_ptr.hbm [resolvable:$true] %s167
      %s169 = sshll.u32 [#allocation20], 4
      %s170 = int_to_ptr.vmem [resolvable:$true] %s169
      %175 = dma.hbm_to_vmem [thread:$0]  %s168, 768, %s170, [#allocation19], 128, 128, 8
    $region53: #{forward.1} parent=1 // pred_fallthru
      _
    // Predicated region
    $region54: #{forward.1} parent=1 // pred_check
      _
    $region55: #{forward.1} parent=1 // pred_check_branch
      %177 = sbr.rel (0) target = $region57
    $region56: #{forward.1} parent=1 // pred_region
      _
    $region57: #{forward.1} parent=1 // pred_fallthru
      _
    // Predicated region
    $region58: #{forward.1} parent=1 // pred_check
      _
    $region59: #{forward.1} parent=1 // pred_check_branch
      %179 = sbr.rel (0) target = $region61
    $region60: #{forward.1} parent=1 // pred_region
      _
    $region61: #{forward.1} parent=1 // pred_fallthru
      _
    // Predicated region
    $region62: #{forward.1} parent=1 // pred_check
      _
    $region63: #{forward.1} parent=1 // pred_check_branch
      %181 = sbr.rel (0) target = $region65
    $region64: #{forward.1} parent=1 // pred_region
      %183 = vsyncadd [#allocation22], 0
      %s184 = sshll.u32 %s15, 4
      %s185 = int_to_ptr.hbm [resolvable:$true] %s184
      %s186 = sshll.u32 [#allocation21], 4
      %s187 = int_to_ptr.vmem [resolvable:$true] %s186
      %192 = dma.hbm_to_vmem [thread:$0]  %s185, 768, %s187, [#allocation22], 128, 128, 8
    $region65: #{forward.1} parent=1 // pred_fallthru
      _
    // Predicated region
    $region66: #{forward.1} parent=1 // pred_check
      _
    $region67: #{forward.1} parent=1 // pred_check_branch
      %194 = sbr.rel (0) target = $region69
    $region68: #{forward.1} parent=1 // pred_region
      _
    $region69: #{forward.1} parent=1 // pred_fallthru
      _
    // Predicated region
    $region70: #{forward.1} parent=1 // pred_check
      _
    $region71: #{forward.1} parent=1 // pred_check_branch
      %196 = sbr.rel (0) target = $region73
    $region72: #{forward.1} parent=1 // pred_region
      _
    $region73: #{forward.1} parent=1 // pred_fallthru
      _
    // Predicated region
    $region74: #{forward.1} parent=1 // pred_check
      _
    $region75: #{forward.1} parent=1 // pred_check_branch
      %198 = sbr.rel (0) target = $region77
    $region76: #{forward.1} parent=1 // pred_region
      _
    $region77: #{forward.1} parent=1 // pred_fallthru
      _
    // Predicated region
    $region78: #{forward.1} parent=1 // pred_check
      _
    $region79: #{forward.1} parent=1 // pred_check_branch
      %200 = sbr.rel (0) target = $region81
    $region80: #{forward.1} parent=1 // pred_region
      %202 = dma.done [#allocation4], 768
    $region81: #{forward.1} parent=1 // pred_fallthru
      _
    // Predicated region
    $region82: #{forward.1} parent=1 // pred_check
      _
    $region83: #{forward.1} parent=1 // pred_check_branch
      %204 = sbr.rel (0) target = $region85
    $region84: #{forward.1} parent=1 // pred_region
      %206 = dma.done [#allocation7], 16
    $region85: #{forward.1} parent=1 // pred_fallthru
      _
    // Predicated region
    $region86: #{forward.1} parent=1 // pred_check
      _
    $region87: #{forward.1} parent=1 // pred_check_branch
      %208 = sbr.rel (0) target = $region89
    $region88: #{forward.1} parent=1 // pred_region
      %210 = dma.done [#allocation7], 16
    $region89: #{forward.1} parent=1 // pred_fallthru
      _
    // Predicated region
    $region90: #{forward.1} parent=1 // pred_check
      _
    $region91: #{forward.1} parent=1 // pred_check_branch
      %212 = sbr.rel (0) target = $region93
    $region92: #{forward.1} parent=1 // pred_region
      %214 = dma.done [#allocation10], 512
    $region93: #{forward.1} parent=1 // pred_fallthru
      _
    // Predicated region
    $region94: #{forward.1} parent=1 // pred_check
      _
    $region95: #{forward.1} parent=1 // pred_check_branch
      %216 = sbr.rel (0) target = $region97
    $region96: #{forward.1} parent=1 // pred_region
      %218 = dma.done [#allocation10], 16
    $region97: #{forward.1} parent=1 // pred_fallthru
      _
    // Predicated region
    $region98: #{forward.1} parent=1 // pred_check
      _
    $region99: #{forward.1} parent=1 // pred_check_branch
      %220 = sbr.rel (0) target = $region101
    $region100: #{forward.1} parent=1 // pred_region
      %222 = dma.done [#allocation13], 512
    $region101: #{forward.1} parent=1 // pred_fallthru
      _
    // Predicated region
    $region102: #{forward.1} parent=1 // pred_check
      _
    $region103: #{forward.1} parent=1 // pred_check_branch
      %224 = sbr.rel (0) target = $region105
    $region104: #{forward.1} parent=1 // pred_region
      %226 = dma.done [#allocation13], 32
    $region105: #{forward.1} parent=1 // pred_fallthru
      _
    // Predicated region
    $region106: #{forward.1} parent=1 // pred_check
      _
    $region107: #{forward.1} parent=1 // pred_check_branch
      %228 = sbr.rel (0) target = $region109
    $region108: #{forward.1} parent=1 // pred_region
      %230 = dma.done [#allocation16], 512
    $region109: #{forward.1} parent=1 // pred_fallthru
      _
    // Predicated region
    $region110: #{forward.1} parent=1 // pred_check
      _
    $region111: #{forward.1} parent=1 // pred_check_branch
      %232 = sbr.rel (0) target = $region113
    $region112: #{forward.1} parent=1 // pred_region
      %234 = dma.done [#allocation16], 32
    $region113: #{forward.1} parent=1 // pred_fallthru
      _
    // Predicated region
    $region114: #{forward.1} parent=1 // pred_check
      _
    $region115: #{forward.1} parent=1 // pred_check_branch
      %236 = sbr.rel (0) target = $region117
    $region116: #{forward.1} parent=1 // pred_region
      %238 = dma.done [#allocation19], 768
    $region117: #{forward.1} parent=1 // pred_fallthru
      _
    // Predicated region
    $region118: #{forward.1} parent=1 // pred_check
      _
    $region119: #{forward.1} parent=1 // pred_check_branch
      %240 = sbr.rel (0) target = $region121
    $region120: #{forward.1} parent=1 // pred_region
      %242 = dma.done [#allocation19], 768
    $region121: #{forward.1} parent=1 // pred_fallthru
      _
    // Predicated region
    $region122: #{forward.1} parent=1 // pred_check
      _
    $region123: #{forward.1} parent=1 // pred_check_branch
      %244 = sbr.rel (0) target = $region125
    $region124: #{forward.1} parent=1 // pred_region
      %246 = dma.done [#allocation22], 768
    $region125: #{forward.1} parent=1 // pred_fallthru
      _
    %v247 = vld [vmem:[%s0] sm:$0xff]
    %v248 = vld [vmem:[%s0 + $0x8] sm:$0xff]
    %v249 = vld [vmem:[%s0 + $0x10] sm:$0x3]
    %v250 = vld [vmem:[%s0 + $0x18] sm:$0xff]
    %v251 = vld [vmem:[%s0 + $0x20] sm:$0xff]
    %v252 = vld [vmem:[%s0 + $0x28] sm:$0x3]
    %vm259 = vcmask 1046528
    %v260 = vrot.slane %v247, 1
    %v261 = vrot.slane %v248, 1
    %v262 = vsel %vm259, %v260, %v261
    %v263 = vrot.slane %v249, 1
    %v264 = vsel %vm259, %v261, %v263
    %v265 = vrot.slane %v250, 1
    %v266 = vrot.slane %v251, 1
    %v267 = vsel %vm259, %v265, %v266
    %v268 = vrot.slane %v252, 1
    %v269 = vsel %vm259, %v266, %v268
    %274 = vrot.lane.b32.xlu0 %v262, 16
    %v275 = vpop.permute.xlu0 %274
    %276 = vrot.lane.b32.xlu0 %v264, 16
    %v277 = vpop.permute.xlu0 %276
    %278 = vrot.lane.b32.xlu0 %v267, 16
    %v279 = vpop.permute.xlu0 %278
    %280 = vrot.lane.b32.xlu0 %v269, 16
    %v281 = vpop.permute.xlu0 %280
    %vm286 = vcmask 1045504
    %v287 = vrot.slane %v247, 2
    %v288 = vrot.slane %v248, 2
    %v289 = vsel %vm286, %v287, %v288
    %v290 = vrot.slane %v249, 2
    %v291 = vsel %vm286, %v288, %v290
    %v292 = vrot.slane %v250, 2
    %v293 = vrot.slane %v251, 2
    %v294 = vsel %vm286, %v292, %v293
    %v295 = vrot.slane %v252, 2
    %v296 = vsel %vm286, %v293, %v295
    %297 = vrot.lane.b32.xlu0 %v289, 32
    %v298 = vpop.permute.xlu0 %297
    %299 = vrot.lane.b32.xlu0 %v291, 32
    %v300 = vpop.permute.xlu0 %299
    %301 = vrot.lane.b32.xlu0 %v294, 32
    %v302 = vpop.permute.xlu0 %301
    %303 = vrot.lane.b32.xlu0 %v296, 32
    %v304 = vpop.permute.xlu0 %303
    %vm309 = vcmask 130048
    %v310 = vsel %vm309, %v247, %v275
    %v311 = vsel %vm309, %v248, %v277
    %v312 = vsel %vm309, %v250, %v279
    %v313 = vsel %vm309, %v251, %v281
    %vm314 = vcmask 261120
    %v315 = vsel %vm314, %v310, %v298
    %v316 = vsel %vm314, %v311, %v300
    %v317 = vsel %vm314, %v312, %v302
    %v318 = vsel %vm314, %v313, %v304
    %v319 = vld [vmem:[#allocation3] sm:$0xff]
    %v320 = vld [vmem:[#allocation3 + $0x8] sm:$0xff]
    %v321 = vld [vmem:[#allocation3 + $0x10] sm:$0xff]
    %v322 = vld [vmem:[#allocation3 + $0x18] sm:$0xff]
    %v323 = vld [vmem:[#allocation3 + $0x20] sm:$0xff]
    %v324 = vld [vmem:[#allocation3 + $0x28] sm:$0xff]
    %v325 = vld [vmem:[#allocation6] sm:$0x1]
    %v327 = vperm.slane %v325, 0
    %vm329 = vcmask 392192
    %v331 = vsel %vm329, %v315, 0
    %v334 = vsel %vm329, %v316, 0
    %v337 = vsel %vm329, %v317, 0
    %v340 = vsel %vm329, %v318, 0
    %342 = vmatpush.msra.mxu0 0.0
    %343 = vmatpush.msra.mxu0 0.0
    %344 = vmatpush.msra.mxu0 0.0
    %345 = vmatpush.msra.mxu0 0.0
    %346 = vmatpush.msra.mxu0 0.0
    %347 = vmatpush.msra.mxu0 0.0
    %348 = vmatpush.msra.mxu0 0.0
    %349 = vmatpush.msra.mxu0 0.0
    %350 = vmatpush.msra.mxu0 0.0
    %351 = vmatpush.msra.mxu0 0.0
    %352 = vmatpush.msra.mxu0 %v324
    %353 = vmatpush.msra.mxu0 %v323
    %354 = vmatpush.msra.mxu0 %v322
    %355 = vmatpush.msra.mxu0 %v321
    %356 = vmatpush.msra.mxu0 %v320
    %357 = vmatpush.msra.mxu0 %v319
    %358 = vmatmul.f32.gmra.mxu0 %v331
    %v359 = vpop.f32.mrf.mxu0
    %v360 = vadd.f32 %v327, %v359
    %361 = vmatmul.f32.gmra.mxu0 %v334
    %v362 = vpop.f32.mrf.mxu0
    %v363 = vadd.f32 %v327, %v362
    %364 = vmatmul.f32.gmra.mxu0 %v337
    %v365 = vpop.f32.mrf.mxu0
    %v366 = vadd.f32 %v327, %v365
    %367 = vmatmul.f32.gmra.mxu0 %v340
    %v368 = vpop.f32.mrf.mxu0
    %v369 = vadd.f32 %v327, %v368
    %370 = vdwg.mxu0
    %v371 = vmax.f32 %v360, 0.0
    %v372 = vmax.f32 %v363, 0.0
    %v373 = vmax.f32 %v366, 0.0
    %v374 = vmax.f32 %v369, 0.0
    %375 = vst.msk [vmem:[#allocation2] sm:$0xff] %vm314, 0.0
    %376 = vst.msk [vmem:[#allocation2 + $0x8] sm:$0xff] %vm314, 0.0
    %vm377 = vcmask 254976
    %378 = vst.msk [vmem:[#allocation2 + $0x10] sm:$0x3] %vm377, 0.0
    %379 = vst.msk [vmem:[#allocation2 + $0x18] sm:$0xff] %vm314, 0.0
    %380 = vst.msk [vmem:[#allocation2 + $0x20] sm:$0xff] %vm314, 0.0
    %381 = vst.msk [vmem:[#allocation2 + $0x28] sm:$0x3] %vm377, 0.0
    %382 = vst.msk [vmem:[#allocation2 + $0x1] sm:$0xff] %vm314, %v371
    %383 = vst.msk [vmem:[#allocation2 + $0x9] sm:$0xff] %vm314, %v372
    %384 = vst.msk [vmem:[#allocation2 + $0x19] sm:$0xff] %vm314, %v373
    %385 = vst.msk [vmem:[#allocation2 + $0x21] sm:$0xff] %vm314, %v374
    %v386 = vld [vmem:[#allocation2] sm:$0xff]
    %v387 = vld [vmem:[#allocation2 + $0x8] sm:$0xff]
    %v388 = vld [vmem:[#allocation2 + $0x10] sm:$0x3]
    %v389 = vld [vmem:[#allocation2 + $0x18] sm:$0xff]
    %v390 = vld [vmem:[#allocation2 + $0x20] sm:$0xff]
    %v391 = vld [vmem:[#allocation2 + $0x28] sm:$0x3]
    %v398 = vrot.slane %v386, 1
    %v399 = vrot.slane %v387, 1
    %v400 = vsel %vm259, %v398, %v399
    %v401 = vrot.slane %v388, 1
    %v402 = vsel %vm259, %v399, %v401
    %v403 = vrot.slane %v389, 1
    %v404 = vrot.slane %v390, 1
    %v405 = vsel %vm259, %v403, %v404
    %v406 = vrot.slane %v391, 1
    %v407 = vsel %vm259, %v404, %v406
    %408 = vrot.lane.b32.xlu0 %v400, 32
    %v409 = vpop.permute.xlu0 %408
    %410 = vrot.lane.b32.xlu0 %v402, 32
    %v411 = vpop.permute.xlu0 %410
    %412 = vrot.lane.b32.xlu0 %v405, 32
    %v413 = vpop.permute.xlu0 %412
    %414 = vrot.lane.b32.xlu0 %v407, 32
    %v415 = vpop.permute.xlu0 %414
    %v420 = vrot.slane %v386, 2
    %v421 = vrot.slane %v387, 2
    %v422 = vsel %vm286, %v420, %v421
    %v423 = vrot.slane %v388, 2
    %v424 = vsel %vm286, %v421, %v423
    %v425 = vrot.slane %v389, 2
    %v426 = vrot.slane %v390, 2
    %v427 = vsel %vm286, %v425, %v426
    %v428 = vrot.slane %v391, 2
    %v429 = vsel %vm286, %v426, %v428
    %430 = vrot.lane.b32.xlu0 %v422, 64
    %v431 = vpop.permute.xlu0 %430
    %432 = vrot.lane.b32.xlu0 %v424, 64
    %v433 = vpop.permute.xlu0 %432
    %434 = vrot.lane.b32.xlu0 %v427, 64
    %v435 = vpop.permute.xlu0 %434
    %436 = vrot.lane.b32.xlu0 %v429, 64
    %v437 = vpop.permute.xlu0 %436
    %v442 = vsel %vm314, %v386, %v409
    %v443 = vsel %vm314, %v387, %v411
    %v444 = vsel %vm314, %v389, %v413
    %v445 = vsel %vm314, %v390, %v415
    %vm446 = vcmask 523264
    %v447 = vsel %vm446, %v442, %v431
    %v448 = vsel %vm446, %v443, %v433
    %v449 = vsel %vm446, %v444, %v435
    %v450 = vsel %vm446, %v445, %v437
    %v451 = vld [vmem:[%s3] sm:$0xff]
    %v452 = vld [vmem:[%s3 + $0x8] sm:$0xff]
    %v453 = vld [vmem:[%s3 + $0x10] sm:$0xff]
    %v454 = vld [vmem:[%s3 + $0x18] sm:$0xff]
    %v455 = vld [vmem:[%s3 + $0x20] sm:$0xff]
    %v456 = vld [vmem:[%s3 + $0x28] sm:$0xff]
    %v457 = vld [vmem:[%s3 + $0x30] sm:$0xff]
    %v458 = vld [vmem:[%s3 + $0x38] sm:$0xff]
    %v459 = vld [vmem:[%s3 + $0x40] sm:$0xff]
    %v460 = vld [vmem:[%s3 + $0x48] sm:$0xff]
    %v461 = vld [vmem:[%s3 + $0x50] sm:$0xff]
    %v462 = vld [vmem:[%s3 + $0x58] sm:$0xff]
    %v463 = vld [vmem:[#allocation8] sm:$0x1]
    %v465 = vperm.slane %v463, 0
    %vm467 = vcmask 785408
    %v469 = vsel %vm467, %v447, 0
    %v472 = vsel %vm467, %v448, 0
    %v475 = vsel %vm467, %v449, 0
    %v478 = vsel %vm467, %v450, 0
    %480 = vmatpush.msra.mxu0 0.0
    %481 = vmatpush.msra.mxu0 0.0
    %482 = vmatpush.msra.mxu0 0.0
    %483 = vmatpush.msra.mxu0 0.0
    %484 = vmatpush.msra.mxu0 %v462
    %485 = vmatpush.msra.mxu0 %v461
    %486 = vmatpush.msra.mxu0 %v460
    %487 = vmatpush.msra.mxu0 %v459
    %488 = vmatpush.msra.mxu0 %v458
    %489 = vmatpush.msra.mxu0 %v457
    %490 = vmatpush.msra.mxu0 %v456
    %491 = vmatpush.msra.mxu0 %v455
    %492 = vmatpush.msra.mxu0 %v454
    %493 = vmatpush.msra.mxu0 %v453
    %494 = vmatpush.msra.mxu0 %v452
    %495 = vmatpush.msra.mxu0 %v451
    %496 = vmatmul.f32.gmra.mxu0 %v469
    %v497 = vpop.f32.mrf.mxu0
    %v498 = vadd.f32 %v465, %v497
    %499 = vmatmul.f32.gmra.mxu0 %v472
    %v500 = vpop.f32.mrf.mxu0
    %v501 = vadd.f32 %v465, %v500
    %502 = vmatmul.f32.gmra.mxu0 %v475
    %v503 = vpop.f32.mrf.mxu0
    %v504 = vadd.f32 %v465, %v503
    %505 = vmatmul.f32.gmra.mxu0 %v478
    %v506 = vpop.f32.mrf.mxu0
    %v507 = vadd.f32 %v465, %v506
    %508 = vdwg.mxu0
    %v509 = vmax.f32 %v498, 0.0
    %v510 = vmax.f32 %v501, 0.0
    %v511 = vmax.f32 %v504, 0.0
    %v512 = vmax.f32 %v507, 0.0
    %v513 = vld [vmem:[#allocation9] sm:$0xff]
    %v514 = vld [vmem:[#allocation9 + $0x8] sm:$0xff]
    %v515 = vld [vmem:[#allocation9 + $0x10] sm:$0xff]
    %v516 = vld [vmem:[#allocation9 + $0x18] sm:$0xff]
    %v517 = vld [vmem:[#allocation11] sm:$0x1]
    %v519 = vperm.slane %v517, 0
    %v522 = vsel %vm314, %v509, 0
    %v525 = vsel %vm314, %v510, 0
    %v528 = vsel %vm314, %v511, 0
    %v531 = vsel %vm314, %v512, 0
    %533 = vmatpush.msra.mxu0 0.0
    %534 = vmatpush.msra.mxu0 0.0
    %535 = vmatpush.msra.mxu0 0.0
    %536 = vmatpush.msra.mxu0 0.0
    %537 = vmatpush.msra.mxu0 0.0
    %538 = vmatpush.msra.mxu0 0.0
    %539 = vmatpush.msra.mxu0 0.0
    %540 = vmatpush.msra.mxu0 0.0
    %541 = vmatpush.msra.mxu0 0.0
    %542 = vmatpush.msra.mxu0 0.0
    %543 = vmatpush.msra.mxu0 0.0
    %544 = vmatpush.msra.mxu0 0.0
    %545 = vmatpush.msra.mxu0 %v516
    %546 = vmatpush.msra.mxu0 %v515
    %547 = vmatpush.msra.mxu0 %v514
    %548 = vmatpush.msra.mxu0 %v513
    %549 = vmatmul.f32.gmra.mxu0 %v522
    %v550 = vpop.f32.mrf.mxu0
    %v551 = vadd.f32 %v519, %v550
    %552 = vmatmul.f32.gmra.mxu0 %v525
    %v553 = vpop.f32.mrf.mxu0
    %v554 = vadd.f32 %v519, %v553
    %555 = vmatmul.f32.gmra.mxu0 %v528
    %v556 = vpop.f32.mrf.mxu0
    %v557 = vadd.f32 %v519, %v556
    %558 = vmatmul.f32.gmra.mxu0 %v531
    %v559 = vpop.f32.mrf.mxu0
    %v560 = vadd.f32 %v519, %v559
    %561 = vdwg.mxu0
    %v562 = vadd.f32 %v262, %v551
    %v563 = vadd.f32 %v264, %v554
    %v564 = vadd.f32 %v267, %v557
    %v565 = vadd.f32 %v269, %v560
    %v566 = vld [vmem:[#allocation12] sm:$0xff]
    %v567 = vld [vmem:[#allocation12 + $0x8] sm:$0xff]
    %v568 = vld [vmem:[#allocation12 + $0x10] sm:$0xff]
    %v569 = vld [vmem:[#allocation12 + $0x18] sm:$0xff]
    %v570 = vld [vmem:[#allocation14] sm:$0x1]
    %v571 = vld [vmem:[#allocation14 + $0x1] sm:$0x1]
    %v572 = vld [vmem:[#allocation15] sm:$0xff]
    %v573 = vld [vmem:[#allocation15 + $0x8] sm:$0xff]
    %v574 = vld [vmem:[#allocation15 + $0x10] sm:$0xff]
    %v575 = vld [vmem:[#allocation15 + $0x18] sm:$0xff]
    %v576 = vld [vmem:[#allocation17] sm:$0x1]
    %v577 = vld [vmem:[#allocation17 + $0x1] sm:$0x1]
    %v579 = vperm.slane %v570, 0
    %v582 = vsel %vm309, %v562, 0
    %v585 = vsel %vm309, %v563, 0
    %v588 = vsel %vm309, %v564, 0
    %v591 = vsel %vm309, %v565, 0
    %593 = vmatpush.msra.mxu0 0.0
    %594 = vmatpush.msra.mxu0 0.0
    %595 = vmatpush.msra.mxu0 0.0
    %596 = vmatpush.msra.mxu0 0.0
    %597 = vmatpush.msra.mxu0 0.0
    %598 = vmatpush.msra.mxu0 0.0
    %599 = vmatpush.msra.mxu0 0.0
    %600 = vmatpush.msra.mxu0 0.0
    %601 = vmatpush.msra.mxu0 0.0
    %602 = vmatpush.msra.mxu0 0.0
    %603 = vmatpush.msra.mxu0 0.0
    %604 = vmatpush.msra.mxu0 0.0
    %605 = vmatpush.msra.mxu0 0.0
    %606 = vmatpush.msra.mxu0 0.0
    %607 = vmatpush.msra.mxu0 %v567
    %608 = vmatpush.msra.mxu0 %v566
    %609 = vmatmul.f32.gmra.mxu0 %v582
    %v610 = vpop.f32.mrf.mxu0
    %v611 = vadd.f32 %v579, %v610
    %612 = vmatmul.f32.gmra.mxu0 %v585
    %v613 = vpop.f32.mrf.mxu0
    %v614 = vadd.f32 %v579, %v613
    %615 = vmatmul.f32.gmra.mxu0 %v588
    %v616 = vpop.f32.mrf.mxu0
    %v617 = vadd.f32 %v579, %v616
    %618 = vmatmul.f32.gmra.mxu0 %v591
    %v619 = vpop.f32.mrf.mxu0
    %v620 = vadd.f32 %v579, %v619
    %621 = vdwg.mxu0
    %v622 = vmax.f32 %v611, 0.0
    %v623 = vmax.f32 %v614, 0.0
    %v624 = vmax.f32 %v617, 0.0
    %v625 = vmax.f32 %v620, 0.0
    %v627 = vperm.slane %v576, 0
    %629 = vmatpush.msra.mxu0 0.0
    %630 = vmatpush.msra.mxu0 0.0
    %631 = vmatpush.msra.mxu0 0.0
    %632 = vmatpush.msra.mxu0 0.0
    %633 = vmatpush.msra.mxu0 0.0
    %634 = vmatpush.msra.mxu0 0.0
    %635 = vmatpush.msra.mxu0 0.0
    %636 = vmatpush.msra.mxu0 0.0
    %637 = vmatpush.msra.mxu0 0.0
    %638 = vmatpush.msra.mxu0 0.0
    %639 = vmatpush.msra.mxu0 0.0
    %640 = vmatpush.msra.mxu0 0.0
    %641 = vmatpush.msra.mxu0 0.0
    %642 = vmatpush.msra.mxu0 0.0
    %643 = vmatpush.msra.mxu0 %v573
    %644 = vmatpush.msra.mxu0 %v572
    %645 = vmatmul.f32.gmra.mxu0 %v582
    %v646 = vpop.f32.mrf.mxu0
    %v647 = vadd.f32 %v627, %v646
    %648 = vmatmul.f32.gmra.mxu0 %v585
    %v649 = vpop.f32.mrf.mxu0
    %v650 = vadd.f32 %v627, %v649
    %651 = vmatmul.f32.gmra.mxu0 %v588
    %v652 = vpop.f32.mrf.mxu0
    %v653 = vadd.f32 %v627, %v652
    %654 = vmatmul.f32.gmra.mxu0 %v591
    %v655 = vpop.f32.mrf.mxu0
    %v656 = vadd.f32 %v627, %v655
    %657 = vdwg.mxu0
    %v658 = vxor.u32 %v647, 2147483648
    %v659 = vxor.u32 %v650, 2147483648
    %v660 = vxor.u32 %v653, 2147483648
    %v661 = vxor.u32 %v656, 2147483648
    %v662 = vmul.f32 %v658, 1.442695
    %v663 = vpow.pop %v662
    %v664 = vmul.f32 %v659, 1.442695
    %v665 = vpow.pop %v664
    %v666 = vmul.f32 %v660, 1.442695
    %v667 = vpow.pop %v666
    %v668 = vmul.f32 %v661, 1.442695
    %v669 = vpow.pop %v668
    %v670 = vadd.f32 %v663, 1.0
    %v671 = vadd.f32 %v665, 1.0
    %v672 = vadd.f32 %v667, 1.0
    %v673 = vadd.f32 %v669, 1.0
    %v674 = vrcp.pop %v670
    %v675 = vmul.f32 %v670, %v674
    %v676 = vsub.f32 1.0, %v675
    %v677 = vmul.f32 %v674, %v676
    %v678 = vadd.f32 %v674, %v677
    %vm679 = vweird.f32 %v670
    %vm680 = vweird.f32 %v674
    %vm681 = vmor %vm679, %vm680
    %v682 = vsel %vm681, %v674, %v678
    %v683 = vand.u32 2147483647, %v670
    %vm684 = vcmp.eq.f32.partialorder %v683, 8.507059e+37
    %v685 = vand.u32 %v670, 2147483648
    %v686 = vor.u32 1.1754944e-38, %v685
    %v687 = vsel %vm684, %v686, %v682
    %v688 = vmul.f32 1.0, %v687
    %v689 = vrcp.pop %v671
    %v690 = vmul.f32 %v671, %v689
    %v691 = vsub.f32 1.0, %v690
    %v692 = vmul.f32 %v689, %v691
    %v693 = vadd.f32 %v689, %v692
    %vm694 = vweird.f32 %v671
    %vm695 = vweird.f32 %v689
    %vm696 = vmor %vm694, %vm695
    %v697 = vsel %vm696, %v689, %v693
    %v698 = vand.u32 2147483647, %v671
    %vm699 = vcmp.eq.f32.partialorder %v698, 8.507059e+37
    %v700 = vand.u32 %v671, 2147483648
    %v701 = vor.u32 1.1754944e-38, %v700
    %v702 = vsel %vm699, %v701, %v697
    %v703 = vmul.f32 1.0, %v702
    %v704 = vrcp.pop %v672
    %v705 = vmul.f32 %v672, %v704
    %v706 = vsub.f32 1.0, %v705
    %v707 = vmul.f32 %v704, %v706
    %v708 = vadd.f32 %v704, %v707
    %vm709 = vweird.f32 %v672
    %vm710 = vweird.f32 %v704
    %vm711 = vmor %vm709, %vm710
    %v712 = vsel %vm711, %v704, %v708
    %v713 = vand.u32 2147483647, %v672
    %vm714 = vcmp.eq.f32.partialorder %v713, 8.507059e+37
    %v715 = vand.u32 %v672, 2147483648
    %v716 = vor.u32 1.1754944e-38, %v715
    %v717 = vsel %vm714, %v716, %v712
    %v718 = vmul.f32 1.0, %v717
    %v719 = vrcp.pop %v673
    %v720 = vmul.f32 %v673, %v719
    %v721 = vsub.f32 1.0, %v720
    %v722 = vmul.f32 %v719, %v721
    %v723 = vadd.f32 %v719, %v722
    %vm724 = vweird.f32 %v673
    %vm725 = vweird.f32 %v719
    %vm726 = vmor %vm724, %vm725
    %v727 = vsel %vm726, %v719, %v723
    %v728 = vand.u32 2147483647, %v673
    %vm729 = vcmp.eq.f32.partialorder %v728, 8.507059e+37
    %v730 = vand.u32 %v673, 2147483648
    %v731 = vor.u32 1.1754944e-38, %v730
    %v732 = vsel %vm729, %v731, %v727
    %v733 = vmul.f32 1.0, %v732
    %v734 = vmul.f32 %v622, %v688
    %v735 = vmul.f32 %v623, %v703
    %v736 = vmul.f32 %v624, %v718
    %v737 = vmul.f32 %v625, %v733
    %v738 = vsub.f32 1.0, %v688
    %v739 = vsub.f32 1.0, %v703
    %v740 = vsub.f32 1.0, %v718
    %v741 = vsub.f32 1.0, %v733
    %v742 = vmul.f32 %v562, %v738
    %v743 = vmul.f32 %v563, %v739
    %v744 = vmul.f32 %v564, %v740
    %v745 = vmul.f32 %v565, %v741
    %v746 = vadd.f32 %v734, %v742
    %v747 = vadd.f32 %v735, %v743
    %v748 = vadd.f32 %v736, %v744
    %v749 = vadd.f32 %v737, %v745
    %v751 = vperm.slane %v571, 0
    %v754 = vsel %vm309, %v746, 0
    %v757 = vsel %vm309, %v747, 0
    %v760 = vsel %vm309, %v748, 0
    %v763 = vsel %vm309, %v749, 0
    %765 = vmatpush.msra.mxu0 0.0
    %766 = vmatpush.msra.mxu0 0.0
    %767 = vmatpush.msra.mxu0 0.0
    %768 = vmatpush.msra.mxu0 0.0
    %769 = vmatpush.msra.mxu0 0.0
    %770 = vmatpush.msra.mxu0 0.0
    %771 = vmatpush.msra.mxu0 0.0
    %772 = vmatpush.msra.mxu0 0.0
    %773 = vmatpush.msra.mxu0 0.0
    %774 = vmatpush.msra.mxu0 0.0
    %775 = vmatpush.msra.mxu0 0.0
    %776 = vmatpush.msra.mxu0 0.0
    %777 = vmatpush.msra.mxu0 0.0
    %778 = vmatpush.msra.mxu0 0.0
    %779 = vmatpush.msra.mxu0 %v569
    %780 = vmatpush.msra.mxu0 %v568
    %781 = vmatmul.f32.gmra.mxu0 %v754
    %v782 = vpop.f32.mrf.mxu0
    %v783 = vadd.f32 %v751, %v782
    %784 = vmatmul.f32.gmra.mxu0 %v757
    %v785 = vpop.f32.mrf.mxu0
    %v786 = vadd.f32 %v751, %v785
    %787 = vmatmul.f32.gmra.mxu0 %v760
    %v788 = vpop.f32.mrf.mxu0
    %v789 = vadd.f32 %v751, %v788
    %790 = vmatmul.f32.gmra.mxu0 %v763
    %v791 = vpop.f32.mrf.mxu0
    %v792 = vadd.f32 %v751, %v791
    %793 = vdwg.mxu0
    %v794 = vmax.f32 %v783, 0.0
    %v795 = vmax.f32 %v786, 0.0
    %v796 = vmax.f32 %v789, 0.0
    %v797 = vmax.f32 %v792, 0.0
    %v799 = vperm.slane %v577, 0
    %801 = vmatpush.msra.mxu0 0.0
    %802 = vmatpush.msra.mxu0 0.0
    %803 = vmatpush.msra.mxu0 0.0
    %804 = vmatpush.msra.mxu0 0.0
    %805 = vmatpush.msra.mxu0 0.0
    %806 = vmatpush.msra.mxu0 0.0
    %807 = vmatpush.msra.mxu0 0.0
    %808 = vmatpush.msra.mxu0 0.0
    %809 = vmatpush.msra.mxu0 0.0
    %810 = vmatpush.msra.mxu0 0.0
    %811 = vmatpush.msra.mxu0 0.0
    %812 = vmatpush.msra.mxu0 0.0
    %813 = vmatpush.msra.mxu0 0.0
    %814 = vmatpush.msra.mxu0 0.0
    %815 = vmatpush.msra.mxu0 %v575
    %816 = vmatpush.msra.mxu0 %v574
    %817 = vmatmul.f32.gmra.mxu0 %v754
    %v818 = vpop.f32.mrf.mxu0
    %v819 = vadd.f32 %v799, %v818
    %820 = vmatmul.f32.gmra.mxu0 %v757
    %v821 = vpop.f32.mrf.mxu0
    %v822 = vadd.f32 %v799, %v821
    %823 = vmatmul.f32.gmra.mxu0 %v760
    %v824 = vpop.f32.mrf.mxu0
    %v825 = vadd.f32 %v799, %v824
    %826 = vmatmul.f32.gmra.mxu0 %v763
    %v827 = vpop.f32.mrf.mxu0
    %v828 = vadd.f32 %v799, %v827
    %829 = vdwg.mxu0
    %v830 = vxor.u32 %v819, 2147483648
    %v831 = vxor.u32 %v822, 2147483648
    %v832 = vxor.u32 %v825, 2147483648
    %v833 = vxor.u32 %v828, 2147483648
    %v834 = vmul.f32 %v830, 1.442695
    %v835 = vpow.pop %v834
    %v836 = vmul.f32 %v831, 1.442695
    %v837 = vpow.pop %v836
    %v838 = vmul.f32 %v832, 1.442695
    %v839 = vpow.pop %v838
    %v840 = vmul.f32 %v833, 1.442695
    %v841 = vpow.pop %v840
    %v842 = vadd.f32 %v835, 1.0
    %v843 = vadd.f32 %v837, 1.0
    %v844 = vadd.f32 %v839, 1.0
    %v845 = vadd.f32 %v841, 1.0
    %v846 = vrcp.pop %v842
    %v847 = vmul.f32 %v842, %v846
    %v848 = vsub.f32 1.0, %v847
    %v849 = vmul.f32 %v846, %v848
    %v850 = vadd.f32 %v846, %v849
    %vm851 = vweird.f32 %v842
    %vm852 = vweird.f32 %v846
    %vm853 = vmor %vm851, %vm852
    %v854 = vsel %vm853, %v846, %v850
    %v855 = vand.u32 2147483647, %v842
    %vm856 = vcmp.eq.f32.partialorder %v855, 8.507059e+37
    %v857 = vand.u32 %v842, 2147483648
    %v858 = vor.u32 1.1754944e-38, %v857
    %v859 = vsel %vm856, %v858, %v854
    %v860 = vmul.f32 1.0, %v859
    %v861 = vrcp.pop %v843
    %v862 = vmul.f32 %v843, %v861
    %v863 = vsub.f32 1.0, %v862
    %v864 = vmul.f32 %v861, %v863
    %v865 = vadd.f32 %v861, %v864
    %vm866 = vweird.f32 %v843
    %vm867 = vweird.f32 %v861
    %vm868 = vmor %vm866, %vm867
    %v869 = vsel %vm868, %v861, %v865
    %v870 = vand.u32 2147483647, %v843
    %vm871 = vcmp.eq.f32.partialorder %v870, 8.507059e+37
    %v872 = vand.u32 %v843, 2147483648
    %v873 = vor.u32 1.1754944e-38, %v872
    %v874 = vsel %vm871, %v873, %v869
    %v875 = vmul.f32 1.0, %v874
    %v876 = vrcp.pop %v844
    %v877 = vmul.f32 %v844, %v876
    %v878 = vsub.f32 1.0, %v877
    %v879 = vmul.f32 %v876, %v878
    %v880 = vadd.f32 %v876, %v879
    %vm881 = vweird.f32 %v844
    %vm882 = vweird.f32 %v876
    %vm883 = vmor %vm881, %vm882
    %v884 = vsel %vm883, %v876, %v880
    %v885 = vand.u32 2147483647, %v844
    %vm886 = vcmp.eq.f32.partialorder %v885, 8.507059e+37
    %v887 = vand.u32 %v844, 2147483648
    %v888 = vor.u32 1.1754944e-38, %v887
    %v889 = vsel %vm886, %v888, %v884
    %v890 = vmul.f32 1.0, %v889
    %v891 = vrcp.pop %v845
    %v892 = vmul.f32 %v845, %v891
    %v893 = vsub.f32 1.0, %v892
    %v894 = vmul.f32 %v891, %v893
    %v895 = vadd.f32 %v891, %v894
    %vm896 = vweird.f32 %v845
    %vm897 = vweird.f32 %v891
    %vm898 = vmor %vm896, %vm897
    %v899 = vsel %vm898, %v891, %v895
    %v900 = vand.u32 2147483647, %v845
    %vm901 = vcmp.eq.f32.partialorder %v900, 8.507059e+37
    %v902 = vand.u32 %v845, 2147483648
    %v903 = vor.u32 1.1754944e-38, %v902
    %v904 = vsel %vm901, %v903, %v899
    %v905 = vmul.f32 1.0, %v904
    %v906 = vmul.f32 %v794, %v860
    %v907 = vmul.f32 %v795, %v875
    %v908 = vmul.f32 %v796, %v890
    %v909 = vmul.f32 %v797, %v905
    %v910 = vsub.f32 1.0, %v860
    %v911 = vsub.f32 1.0, %v875
    %v912 = vsub.f32 1.0, %v890
    %v913 = vsub.f32 1.0, %v905
    %v914 = vmul.f32 %v746, %v910
    %v915 = vmul.f32 %v747, %v911
    %v916 = vmul.f32 %v748, %v912
    %v917 = vmul.f32 %v749, %v913
    %v918 = vadd.f32 %v906, %v914
    %v919 = vadd.f32 %v907, %v915
    %v920 = vadd.f32 %v908, %v916
    %v921 = vadd.f32 %v909, %v917
    %v922 = vld [vmem:[#allocation18] sm:$0xff]
    %v923 = vld [vmem:[#allocation18 + $0x8] sm:$0xff]
    %v924 = vld [vmem:[#allocation18 + $0x10] sm:$0xff]
    %v925 = vld [vmem:[#allocation18 + $0x18] sm:$0xff]
    %v926 = vld [vmem:[#allocation18 + $0x20] sm:$0xff]
    %v927 = vld [vmem:[#allocation18 + $0x28] sm:$0xff]
    %v928 = vld [vmem:[#allocation20] sm:$0xff]
    %v929 = vld [vmem:[#allocation20 + $0x8] sm:$0xff]
    %v930 = vld [vmem:[#allocation20 + $0x10] sm:$0xff]
    %v931 = vld [vmem:[#allocation20 + $0x18] sm:$0xff]
    %v932 = vld [vmem:[#allocation20 + $0x20] sm:$0xff]
    %v933 = vld [vmem:[#allocation20 + $0x28] sm:$0xff]
    %v934 = vld [vmem:[%s13] sm:$0x1]
    %v935 = vld [vmem:[%s13 + $0x1] sm:$0x1]
    %v936 = vld [vmem:[%s13 + $0x2] sm:$0x1]
    %v937 = vld [vmem:[%s14] sm:$0x1]
    %v938 = vld [vmem:[%s14 + $0x1] sm:$0x1]
    %v939 = vld [vmem:[%s14 + $0x2] sm:$0x1]
    %v940 = vadd.f32 %v934, %v937
    %v942 = vperm.slane %v940, 0
    %v944 = vadd.f32 %v935, %v938
    %v946 = vperm.slane %v944, 0
    %v949 = vperm.slane %v936, 0
    %v952 = vperm.slane %v939, 0
    %v955 = vsel %vm309, 0.0, 0
    %957 = vmatpush.msra.mxu0 0.0
    %958 = vmatpush.msra.mxu0 0.0
    %959 = vmatpush.msra.mxu0 0.0
    %960 = vmatpush.msra.mxu0 0.0
    %961 = vmatpush.msra.mxu0 0.0
    %962 = vmatpush.msra.mxu0 0.0
    %963 = vmatpush.msra.mxu0 0.0
    %964 = vmatpush.msra.mxu0 0.0
    %965 = vmatpush.msra.mxu0 0.0
    %966 = vmatpush.msra.mxu0 0.0
    %967 = vmatpush.msra.mxu0 0.0
    %968 = vmatpush.msra.mxu0 0.0
    %969 = vmatpush.msra.mxu0 0.0
    %970 = vmatpush.msra.mxu0 0.0
    %971 = vmatpush.msra.mxu0 %v929
    %972 = vmatpush.msra.mxu0 %v928
    %973 = vmatmul.f32.gmra.mxu0 %v955
    %v974 = vpop.f32.mrf.mxu0
    %v975 = vadd.f32 0.0, %v974
    %976 = vmatmul.f32.gmra.mxu0 %v955
    %v977 = vpop.f32.mrf.mxu0
    %v978 = vadd.f32 0.0, %v977
    %979 = vdwg.mxu0
    %v981 = vsel %vm309, %v918, 0
    %v984 = vsel %vm309, %v919, 0
    %986 = vmatpush.msra.mxu0 0.0
    %987 = vmatpush.msra.mxu0 0.0
    %988 = vmatpush.msra.mxu0 0.0
    %989 = vmatpush.msra.mxu0 0.0
    %990 = vmatpush.msra.mxu0 0.0
    %991 = vmatpush.msra.mxu0 0.0
    %992 = vmatpush.msra.mxu0 0.0
    %993 = vmatpush.msra.mxu0 0.0
    %994 = vmatpush.msra.mxu0 0.0
    %995 = vmatpush.msra.mxu0 0.0
    %996 = vmatpush.msra.mxu0 0.0
    %997 = vmatpush.msra.mxu0 0.0
    %998 = vmatpush.msra.mxu0 0.0
    %999 = vmatpush.msra.mxu0 0.0
    %1000 = vmatpush.msra.mxu0 %v923
    %1001 = vmatpush.msra.mxu0 %v922
    %1002 = vmatmul.f32.gmra.mxu0 %v981
    %v1003 = vpop.f32.mrf.mxu0
    %v1004 = vadd.f32 %v975, %v1003
    %1005 = vmatmul.f32.gmra.mxu0 %v984
    %v1006 = vpop.f32.mrf.mxu0
    %v1007 = vadd.f32 %v978, %v1006
    %1008 = vdwg.mxu0
    %v1009 = vadd.f32 %v1004, %v942
    %v1010 = vadd.f32 %v1007, %v942
    %v1011 = vxor.u32 %v1009, 2147483648
    %v1012 = vxor.u32 %v1010, 2147483648
    %v1013 = vmul.f32 %v1011, 1.442695
    %v1014 = vpow.pop %v1013
    %v1015 = vmul.f32 %v1012, 1.442695
    %v1016 = vpow.pop %v1015
    %v1017 = vadd.f32 %v1014, 1.0
    %v1018 = vadd.f32 %v1016, 1.0
    %v1019 = vrcp.pop %v1017
    %v1020 = vmul.f32 %v1017, %v1019
    %v1021 = vsub.f32 1.0, %v1020
    %v1022 = vmul.f32 %v1019, %v1021
    %v1023 = vadd.f32 %v1019, %v1022
    %vm1024 = vweird.f32 %v1017
    %vm1025 = vweird.f32 %v1019
    %vm1026 = vmor %vm1024, %vm1025
    %v1027 = vsel %vm1026, %v1019, %v1023
    %v1028 = vand.u32 2147483647, %v1017
    %vm1029 = vcmp.eq.f32.partialorder %v1028, 8.507059e+37
    %v1030 = vand.u32 %v1017, 2147483648
    %v1031 = vor.u32 1.1754944e-38, %v1030
    %v1032 = vsel %vm1029, %v1031, %v1027
    %v1033 = vmul.f32 1.0, %v1032
    %v1034 = vrcp.pop %v1018
    %v1035 = vmul.f32 %v1018, %v1034
    %v1036 = vsub.f32 1.0, %v1035
    %v1037 = vmul.f32 %v1034, %v1036
    %v1038 = vadd.f32 %v1034, %v1037
    %vm1039 = vweird.f32 %v1018
    %vm1040 = vweird.f32 %v1034
    %vm1041 = vmor %vm1039, %vm1040
    %v1042 = vsel %vm1041, %v1034, %v1038
    %v1043 = vand.u32 2147483647, %v1018
    %vm1044 = vcmp.eq.f32.partialorder %v1043, 8.507059e+37
    %v1045 = vand.u32 %v1018, 2147483648
    %v1046 = vor.u32 1.1754944e-38, %v1045
    %v1047 = vsel %vm1044, %v1046, %v1042
    %v1048 = vmul.f32 1.0, %v1047
    %1049 = vmatpush.msra.mxu0 0.0
    %1050 = vmatpush.msra.mxu0 0.0
    %1051 = vmatpush.msra.mxu0 0.0
    %1052 = vmatpush.msra.mxu0 0.0
    %1053 = vmatpush.msra.mxu0 0.0
    %1054 = vmatpush.msra.mxu0 0.0
    %1055 = vmatpush.msra.mxu0 0.0
    %1056 = vmatpush.msra.mxu0 0.0
    %1057 = vmatpush.msra.mxu0 0.0
    %1058 = vmatpush.msra.mxu0 0.0
    %1059 = vmatpush.msra.mxu0 0.0
    %1060 = vmatpush.msra.mxu0 0.0
    %1061 = vmatpush.msra.mxu0 0.0
    %1062 = vmatpush.msra.mxu0 0.0
    %1063 = vmatpush.msra.mxu0 %v931
    %1064 = vmatpush.msra.mxu0 %v930
    %1065 = vmatmul.f32.gmra.mxu0 %v955
    %v1066 = vpop.f32.mrf.mxu0
    %v1067 = vadd.f32 0.0, %v1066
    %1068 = vmatmul.f32.gmra.mxu0 %v955
    %v1069 = vpop.f32.mrf.mxu0
    %v1070 = vadd.f32 0.0, %v1069
    %1071 = vdwg.mxu0
    %1072 = vmatpush.msra.mxu0 0.0
    %1073 = vmatpush.msra.mxu0 0.0
    %1074 = vmatpush.msra.mxu0 0.0
    %1075 = vmatpush.msra.mxu0 0.0
    %1076 = vmatpush.msra.mxu0 0.0
    %1077 = vmatpush.msra.mxu0 0.0
    %1078 = vmatpush.msra.mxu0 0.0
    %1079 = vmatpush.msra.mxu0 0.0
    %1080 = vmatpush.msra.mxu0 0.0
    %1081 = vmatpush.msra.mxu0 0.0
    %1082 = vmatpush.msra.mxu0 0.0
    %1083 = vmatpush.msra.mxu0 0.0
    %1084 = vmatpush.msra.mxu0 0.0
    %1085 = vmatpush.msra.mxu0 0.0
    %1086 = vmatpush.msra.mxu0 %v925
    %1087 = vmatpush.msra.mxu0 %v924
    %1088 = vmatmul.f32.gmra.mxu0 %v981
    %v1089 = vpop.f32.mrf.mxu0
    %v1090 = vadd.f32 %v1067, %v1089
    %1091 = vmatmul.f32.gmra.mxu0 %v984
    %v1092 = vpop.f32.mrf.mxu0
    %v1093 = vadd.f32 %v1070, %v1092
    %1094 = vdwg.mxu0
    %v1095 = vadd.f32 %v1090, %v946
    %v1096 = vadd.f32 %v1093, %v946
    %v1097 = vxor.u32 %v1095, 2147483648
    %v1098 = vxor.u32 %v1096, 2147483648
    %v1099 = vmul.f32 %v1097, 1.442695
    %v1100 = vpow.pop %v1099
    %v1101 = vmul.f32 %v1098, 1.442695
    %v1102 = vpow.pop %v1101
    %v1103 = vadd.f32 %v1100, 1.0
    %v1104 = vadd.f32 %v1102, 1.0
    %v1105 = vrcp.pop %v1103
    %v1106 = vmul.f32 %v1103, %v1105
    %v1107 = vsub.f32 1.0, %v1106
    %v1108 = vmul.f32 %v1105, %v1107
    %v1109 = vadd.f32 %v1105, %v1108
    %vm1110 = vweird.f32 %v1103
    %vm1111 = vweird.f32 %v1105
    %vm1112 = vmor %vm1110, %vm1111
    %v1113 = vsel %vm1112, %v1105, %v1109
    %v1114 = vand.u32 2147483647, %v1103
    %vm1115 = vcmp.eq.f32.partialorder %v1114, 8.507059e+37
    %v1116 = vand.u32 %v1103, 2147483648
    %v1117 = vor.u32 1.1754944e-38, %v1116
    %v1118 = vsel %vm1115, %v1117, %v1113
    %v1119 = vmul.f32 1.0, %v1118
    %v1120 = vrcp.pop %v1104
    %v1121 = vmul.f32 %v1104, %v1120
    %v1122 = vsub.f32 1.0, %v1121
    %v1123 = vmul.f32 %v1120, %v1122
    %v1124 = vadd.f32 %v1120, %v1123
    %vm1125 = vweird.f32 %v1104
    %vm1126 = vweird.f32 %v1120
    %vm1127 = vmor %vm1125, %vm1126
    %v1128 = vsel %vm1127, %v1120, %v1124
    %v1129 = vand.u32 2147483647, %v1104
    %vm1130 = vcmp.eq.f32.partialorder %v1129, 8.507059e+37
    %v1131 = vand.u32 %v1104, 2147483648
    %v1132 = vor.u32 1.1754944e-38, %v1131
    %v1133 = vsel %vm1130, %v1132, %v1128
    %v1134 = vmul.f32 1.0, %v1133
    %1135 = vmatpush.msra.mxu0 0.0
    %1136 = vmatpush.msra.mxu0 0.0
    %1137 = vmatpush.msra.mxu0 0.0
    %1138 = vmatpush.msra.mxu0 0.0
    %1139 = vmatpush.msra.mxu0 0.0
    %1140 = vmatpush.msra.mxu0 0.0
    %1141 = vmatpush.msra.mxu0 0.0
    %1142 = vmatpush.msra.mxu0 0.0
    %1143 = vmatpush.msra.mxu0 0.0
    %1144 = vmatpush.msra.mxu0 0.0
    %1145 = vmatpush.msra.mxu0 0.0
    %1146 = vmatpush.msra.mxu0 0.0
    %1147 = vmatpush.msra.mxu0 0.0
    %1148 = vmatpush.msra.mxu0 0.0
    %1149 = vmatpush.msra.mxu0 %v927
    %1150 = vmatpush.msra.mxu0 %v926
    %1151 = vmatmul.f32.gmra.mxu0 %v981
    %v1152 = vpop.f32.mrf.mxu0
    %v1153 = vadd.f32 %v949, %v1152
    %1154 = vmatmul.f32.gmra.mxu0 %v984
    %v1155 = vpop.f32.mrf.mxu0
    %v1156 = vadd.f32 %v949, %v1155
    %1157 = vdwg.mxu0
    %1158 = vmatpush.msra.mxu0 0.0
    %1159 = vmatpush.msra.mxu0 0.0
    %1160 = vmatpush.msra.mxu0 0.0
    %1161 = vmatpush.msra.mxu0 0.0
    %1162 = vmatpush.msra.mxu0 0.0
    %1163 = vmatpush.msra.mxu0 0.0
    %1164 = vmatpush.msra.mxu0 0.0
    %1165 = vmatpush.msra.mxu0 0.0
    %1166 = vmatpush.msra.mxu0 0.0
    %1167 = vmatpush.msra.mxu0 0.0
    %1168 = vmatpush.msra.mxu0 0.0
    %1169 = vmatpush.msra.mxu0 0.0
    %1170 = vmatpush.msra.mxu0 0.0
    %1171 = vmatpush.msra.mxu0 0.0
    %1172 = vmatpush.msra.mxu0 %v933
    %1173 = vmatpush.msra.mxu0 %v932
    %1174 = vmatmul.f32.gmra.mxu0 %v955
    %v1175 = vpop.f32.mrf.mxu0
    %v1176 = vadd.f32 %v952, %v1175
    %1177 = vmatmul.f32.gmra.mxu0 %v955
    %v1178 = vpop.f32.mrf.mxu0
    %v1179 = vadd.f32 %v952, %v1178
    %1180 = vdwg.mxu0
    %v1181 = vmul.f32 %v1033, %v1176
    %v1182 = vmul.f32 %v1048, %v1179
    %v1183 = vadd.f32 %v1153, %v1181
    %v1184 = vadd.f32 %v1156, %v1182
    %v1185 = vtanh.pop %v1183
    %v1186 = vtanh.pop %v1184
    %v1187 = vsub.f32 1.0, %v1119
    %v1188 = vsub.f32 1.0, %v1134
    %v1189 = vmul.f32 %v1187, %v1185
    %v1190 = vmul.f32 %v1188, %v1186
    %v1191 = vmul.f32 %v1119, 0.0
    %v1192 = vmul.f32 %v1134, 0.0
    %v1193 = vadd.f32 %v1189, %v1191
    %v1194 = vadd.f32 %v1190, %v1192
    %v1196 = vsel %vm309, %v1193, 0
    %v1199 = vsel %vm309, %v1194, 0
    %1201 = vmatpush.msra.mxu0 0.0
    %1202 = vmatpush.msra.mxu0 0.0
    %1203 = vmatpush.msra.mxu0 0.0
    %1204 = vmatpush.msra.mxu0 0.0
    %1205 = vmatpush.msra.mxu0 0.0
    %1206 = vmatpush.msra.mxu0 0.0
    %1207 = vmatpush.msra.mxu0 0.0
    %1208 = vmatpush.msra.mxu0 0.0
    %1209 = vmatpush.msra.mxu0 0.0
    %1210 = vmatpush.msra.mxu0 0.0
    %1211 = vmatpush.msra.mxu0 0.0
    %1212 = vmatpush.msra.mxu0 0.0
    %1213 = vmatpush.msra.mxu0 0.0
    %1214 = vmatpush.msra.mxu0 0.0
    %1215 = vmatpush.msra.mxu0 %v929
    %1216 = vmatpush.msra.mxu0 %v928
    %1217 = vmatmul.f32.gmra.mxu0 %v1196
    %v1218 = vpop.f32.mrf.mxu0
    %v1219 = vadd.f32 0.0, %v1218
    %1220 = vmatmul.f32.gmra.mxu0 %v1199
    %v1221 = vpop.f32.mrf.mxu0
    %v1222 = vadd.f32 0.0, %v1221
    %1223 = vdwg.mxu0
    %v1225 = vsel %vm309, %v920, 0
    %v1228 = vsel %vm309, %v921, 0
    %1230 = vmatpush.msra.mxu0 0.0
    %1231 = vmatpush.msra.mxu0 0.0
    %1232 = vmatpush.msra.mxu0 0.0
    %1233 = vmatpush.msra.mxu0 0.0
    %1234 = vmatpush.msra.mxu0 0.0
    %1235 = vmatpush.msra.mxu0 0.0
    %1236 = vmatpush.msra.mxu0 0.0
    %1237 = vmatpush.msra.mxu0 0.0
    %1238 = vmatpush.msra.mxu0 0.0
    %1239 = vmatpush.msra.mxu0 0.0
    %1240 = vmatpush.msra.mxu0 0.0
    %1241 = vmatpush.msra.mxu0 0.0
    %1242 = vmatpush.msra.mxu0 0.0
    %1243 = vmatpush.msra.mxu0 0.0
    %1244 = vmatpush.msra.mxu0 %v923
    %1245 = vmatpush.msra.mxu0 %v922
    %1246 = vmatmul.f32.gmra.mxu0 %v1225
    %v1247 = vpop.f32.mrf.mxu0
    %v1248 = vadd.f32 %v1219, %v1247
    %1249 = vmatmul.f32.gmra.mxu0 %v1228
    %v1250 = vpop.f32.mrf.mxu0
    %v1251 = vadd.f32 %v1222, %v1250
    %1252 = vdwg.mxu0
    %v1253 = vadd.f32 %v1248, %v942
    %v1254 = vadd.f32 %v1251, %v942
    %v1255 = vxor.u32 %v1253, 2147483648
    %v1256 = vxor.u32 %v1254, 2147483648
    %v1257 = vmul.f32 %v1255, 1.442695
    %v1258 = vpow.pop %v1257
    %v1259 = vmul.f32 %v1256, 1.442695
    %v1260 = vpow.pop %v1259
    %v1261 = vadd.f32 %v1258, 1.0
    %v1262 = vadd.f32 %v1260, 1.0
    %v1263 = vrcp.pop %v1261
    %v1264 = vmul.f32 %v1261, %v1263
    %v1265 = vsub.f32 1.0, %v1264
    %v1266 = vmul.f32 %v1263, %v1265
    %v1267 = vadd.f32 %v1263, %v1266
    %vm1268 = vweird.f32 %v1261
    %vm1269 = vweird.f32 %v1263
    %vm1270 = vmor %vm1268, %vm1269
    %v1271 = vsel %vm1270, %v1263, %v1267
    %v1272 = vand.u32 2147483647, %v1261
    %vm1273 = vcmp.eq.f32.partialorder %v1272, 8.507059e+37
    %v1274 = vand.u32 %v1261, 2147483648
    %v1275 = vor.u32 1.1754944e-38, %v1274
    %v1276 = vsel %vm1273, %v1275, %v1271
    %v1277 = vmul.f32 1.0, %v1276
    %v1278 = vrcp.pop %v1262
    %v1279 = vmul.f32 %v1262, %v1278
    %v1280 = vsub.f32 1.0, %v1279
    %v1281 = vmul.f32 %v1278, %v1280
    %v1282 = vadd.f32 %v1278, %v1281
    %vm1283 = vweird.f32 %v1262
    %vm1284 = vweird.f32 %v1278
    %vm1285 = vmor %vm1283, %vm1284
    %v1286 = vsel %vm1285, %v1278, %v1282
    %v1287 = vand.u32 2147483647, %v1262
    %vm1288 = vcmp.eq.f32.partialorder %v1287, 8.507059e+37
    %v1289 = vand.u32 %v1262, 2147483648
    %v1290 = vor.u32 1.1754944e-38, %v1289
    %v1291 = vsel %vm1288, %v1290, %v1286
    %v1292 = vmul.f32 1.0, %v1291
    %1293 = vmatpush.msra.mxu0 0.0
    %1294 = vmatpush.msra.mxu0 0.0
    %1295 = vmatpush.msra.mxu0 0.0
    %1296 = vmatpush.msra.mxu0 0.0
    %1297 = vmatpush.msra.mxu0 0.0
    %1298 = vmatpush.msra.mxu0 0.0
    %1299 = vmatpush.msra.mxu0 0.0
    %1300 = vmatpush.msra.mxu0 0.0
    %1301 = vmatpush.msra.mxu0 0.0
    %1302 = vmatpush.msra.mxu0 0.0
    %1303 = vmatpush.msra.mxu0 0.0
    %1304 = vmatpush.msra.mxu0 0.0
    %1305 = vmatpush.msra.mxu0 0.0
    %1306 = vmatpush.msra.mxu0 0.0
    %1307 = vmatpush.msra.mxu0 %v931
    %1308 = vmatpush.msra.mxu0 %v930
    %1309 = vmatmul.f32.gmra.mxu0 %v1196
    %v1310 = vpop.f32.mrf.mxu0
    %v1311 = vadd.f32 0.0, %v1310
    %1312 = vmatmul.f32.gmra.mxu0 %v1199
    %v1313 = vpop.f32.mrf.mxu0
    %v1314 = vadd.f32 0.0, %v1313
    %1315 = vdwg.mxu0
    %1316 = vmatpush.msra.mxu0 0.0
    %1317 = vmatpush.msra.mxu0 0.0
    %1318 = vmatpush.msra.mxu0 0.0
    %1319 = vmatpush.msra.mxu0 0.0
    %1320 = vmatpush.msra.mxu0 0.0
    %1321 = vmatpush.msra.mxu0 0.0
    %1322 = vmatpush.msra.mxu0 0.0
    %1323 = vmatpush.msra.mxu0 0.0
    %1324 = vmatpush.msra.mxu0 0.0
    %1325 = vmatpush.msra.mxu0 0.0
    %1326 = vmatpush.msra.mxu0 0.0
    %1327 = vmatpush.msra.mxu0 0.0
    %1328 = vmatpush.msra.mxu0 0.0
    %1329 = vmatpush.msra.mxu0 0.0
    %1330 = vmatpush.msra.mxu0 %v925
    %1331 = vmatpush.msra.mxu0 %v924
    %1332 = vmatmul.f32.gmra.mxu0 %v1225
    %v1333 = vpop.f32.mrf.mxu0
    %v1334 = vadd.f32 %v1311, %v1333
    %1335 = vmatmul.f32.gmra.mxu0 %v1228
    %v1336 = vpop.f32.mrf.mxu0
    %v1337 = vadd.f32 %v1314, %v1336
    %1338 = vdwg.mxu0
    %v1339 = vadd.f32 %v1334, %v946
    %v1340 = vadd.f32 %v1337, %v946
    %v1341 = vxor.u32 %v1339, 2147483648
    %v1342 = vxor.u32 %v1340, 2147483648
    %v1343 = vmul.f32 %v1341, 1.442695
    %v1344 = vpow.pop %v1343
    %v1345 = vmul.f32 %v1342, 1.442695
    %v1346 = vpow.pop %v1345
    %v1347 = vadd.f32 %v1344, 1.0
    %v1348 = vadd.f32 %v1346, 1.0
    %v1349 = vrcp.pop %v1347
    %v1350 = vmul.f32 %v1347, %v1349
    %v1351 = vsub.f32 1.0, %v1350
    %v1352 = vmul.f32 %v1349, %v1351
    %v1353 = vadd.f32 %v1349, %v1352
    %vm1354 = vweird.f32 %v1347
    %vm1355 = vweird.f32 %v1349
    %vm1356 = vmor %vm1354, %vm1355
    %v1357 = vsel %vm1356, %v1349, %v1353
    %v1358 = vand.u32 2147483647, %v1347
    %vm1359 = vcmp.eq.f32.partialorder %v1358, 8.507059e+37
    %v1360 = vand.u32 %v1347, 2147483648
    %v1361 = vor.u32 1.1754944e-38, %v1360
    %v1362 = vsel %vm1359, %v1361, %v1357
    %v1363 = vmul.f32 1.0, %v1362
    %v1364 = vrcp.pop %v1348
    %v1365 = vmul.f32 %v1348, %v1364
    %v1366 = vsub.f32 1.0, %v1365
    %v1367 = vmul.f32 %v1364, %v1366
    %v1368 = vadd.f32 %v1364, %v1367
    %vm1369 = vweird.f32 %v1348
    %vm1370 = vweird.f32 %v1364
    %vm1371 = vmor %vm1369, %vm1370
    %v1372 = vsel %vm1371, %v1364, %v1368
    %v1373 = vand.u32 2147483647, %v1348
    %vm1374 = vcmp.eq.f32.partialorder %v1373, 8.507059e+37
    %v1375 = vand.u32 %v1348, 2147483648
    %v1376 = vor.u32 1.1754944e-38, %v1375
    %v1377 = vsel %vm1374, %v1376, %v1372
    %v1378 = vmul.f32 1.0, %v1377
    %1379 = vmatpush.msra.mxu0 0.0
    %1380 = vmatpush.msra.mxu0 0.0
    %1381 = vmatpush.msra.mxu0 0.0
    %1382 = vmatpush.msra.mxu0 0.0
    %1383 = vmatpush.msra.mxu0 0.0
    %1384 = vmatpush.msra.mxu0 0.0
    %1385 = vmatpush.msra.mxu0 0.0
    %1386 = vmatpush.msra.mxu0 0.0
    %1387 = vmatpush.msra.mxu0 0.0
    %1388 = vmatpush.msra.mxu0 0.0
    %1389 = vmatpush.msra.mxu0 0.0
    %1390 = vmatpush.msra.mxu0 0.0
    %1391 = vmatpush.msra.mxu0 0.0
    %1392 = vmatpush.msra.mxu0 0.0
    %1393 = vmatpush.msra.mxu0 %v927
    %1394 = vmatpush.msra.mxu0 %v926
    %1395 = vmatmul.f32.gmra.mxu0 %v1225
    %v1396 = vpop.f32.mrf.mxu0
    %v1397 = vadd.f32 %v949, %v1396
    %1398 = vmatmul.f32.gmra.mxu0 %v1228
    %v1399 = vpop.f32.mrf.mxu0
    %v1400 = vadd.f32 %v949, %v1399
    %1401 = vdwg.mxu0
    %1402 = vmatpush.msra.mxu0 0.0
    %1403 = vmatpush.msra.mxu0 0.0
    %1404 = vmatpush.msra.mxu0 0.0
    %1405 = vmatpush.msra.mxu0 0.0
    %1406 = vmatpush.msra.mxu0 0.0
    %1407 = vmatpush.msra.mxu0 0.0
    %1408 = vmatpush.msra.mxu0 0.0
    %1409 = vmatpush.msra.mxu0 0.0
    %1410 = vmatpush.msra.mxu0 0.0
    %1411 = vmatpush.msra.mxu0 0.0
    %1412 = vmatpush.msra.mxu0 0.0
    %1413 = vmatpush.msra.mxu0 0.0
    %1414 = vmatpush.msra.mxu0 0.0
    %1415 = vmatpush.msra.mxu0 0.0
    %1416 = vmatpush.msra.mxu0 %v933
    %1417 = vmatpush.msra.mxu0 %v932
    %1418 = vmatmul.f32.gmra.mxu0 %v1196
    %v1419 = vpop.f32.mrf.mxu0
    %v1420 = vadd.f32 %v952, %v1419
    %1421 = vmatmul.f32.gmra.mxu0 %v1199
    %v1422 = vpop.f32.mrf.mxu0
    %v1423 = vadd.f32 %v952, %v1422
    %1424 = vdwg.mxu0
    %v1425 = vmul.f32 %v1277, %v1420
    %v1426 = vmul.f32 %v1292, %v1423
    %v1427 = vadd.f32 %v1397, %v1425
    %v1428 = vadd.f32 %v1400, %v1426
    %v1429 = vtanh.pop %v1427
    %v1430 = vtanh.pop %v1428
    %v1431 = vsub.f32 1.0, %v1363
    %v1432 = vsub.f32 1.0, %v1378
    %v1433 = vmul.f32 %v1431, %v1429
    %v1434 = vmul.f32 %v1432, %v1430
    %v1435 = vmul.f32 %v1363, %v1193
    %v1436 = vmul.f32 %v1378, %v1194
    %v1437 = vadd.f32 %v1433, %v1435
    %v1438 = vadd.f32 %v1434, %v1436
    %v1439 = vld [vmem:[#allocation21] sm:$0xff]
    %v1440 = vld [vmem:[#allocation21 + $0x8] sm:$0xff]
    %v1441 = vld [vmem:[#allocation21 + $0x10] sm:$0xff]
    %v1442 = vld [vmem:[#allocation21 + $0x18] sm:$0xff]
    %v1443 = vld [vmem:[#allocation21 + $0x20] sm:$0xff]
    %v1444 = vld [vmem:[#allocation21 + $0x28] sm:$0xff]
    %v1445 = vld [vmem:[%s16] sm:$0xff]
    %v1446 = vld [vmem:[%s16 + $0x8] sm:$0xff]
    %v1447 = vld [vmem:[%s16 + $0x10] sm:$0xff]
    %v1448 = vld [vmem:[%s16 + $0x18] sm:$0xff]
    %v1449 = vld [vmem:[%s16 + $0x20] sm:$0xff]
    %v1450 = vld [vmem:[%s16 + $0x28] sm:$0xff]
    %v1451 = vld [vmem:[%s17] sm:$0x1]
    %v1452 = vld [vmem:[%s17 + $0x1] sm:$0x1]
    %v1453 = vld [vmem:[%s17 + $0x2] sm:$0x1]
    %v1454 = vld [vmem:[%s18] sm:$0x1]
    %v1455 = vld [vmem:[%s18 + $0x1] sm:$0x1]
    %v1456 = vld [vmem:[%s18 + $0x2] sm:$0x1]
    %v1457 = vadd.f32 %v1451, %v1454
    %v1459 = vperm.slane %v1457, 0
    %v1461 = vadd.f32 %v1452, %v1455
    %v1463 = vperm.slane %v1461, 0
    %v1466 = vperm.slane %v1453, 0
    %v1469 = vperm.slane %v1456, 0
    %1471 = vmatpush.msra.mxu0 0.0
    %1472 = vmatpush.msra.mxu0 0.0
    %1473 = vmatpush.msra.mxu0 0.0
    %1474 = vmatpush.msra.mxu0 0.0
    %1475 = vmatpush.msra.mxu0 0.0
    %1476 = vmatpush.msra.mxu0 0.0
    %1477 = vmatpush.msra.mxu0 0.0
    %1478 = vmatpush.msra.mxu0 0.0
    %1479 = vmatpush.msra.mxu0 0.0
    %1480 = vmatpush.msra.mxu0 0.0
    %1481 = vmatpush.msra.mxu0 0.0
    %1482 = vmatpush.msra.mxu0 0.0
    %1483 = vmatpush.msra.mxu0 0.0
    %1484 = vmatpush.msra.mxu0 0.0
    %1485 = vmatpush.msra.mxu0 %v1446
    %1486 = vmatpush.msra.mxu0 %v1445
    %1487 = vmatmul.f32.gmra.mxu0 %v955
    %v1488 = vpop.f32.mrf.mxu0
    %v1489 = vadd.f32 0.0, %v1488
    %1490 = vmatmul.f32.gmra.mxu0 %v955
    %v1491 = vpop.f32.mrf.mxu0
    %v1492 = vadd.f32 0.0, %v1491
    %1493 = vdwg.mxu0
    %1494 = vmatpush.msra.mxu0 0.0
    %1495 = vmatpush.msra.mxu0 0.0
    %1496 = vmatpush.msra.mxu0 0.0
    %1497 = vmatpush.msra.mxu0 0.0
    %1498 = vmatpush.msra.mxu0 0.0
    %1499 = vmatpush.msra.mxu0 0.0
    %1500 = vmatpush.msra.mxu0 0.0
    %1501 = vmatpush.msra.mxu0 0.0
    %1502 = vmatpush.msra.mxu0 0.0
    %1503 = vmatpush.msra.mxu0 0.0
    %1504 = vmatpush.msra.mxu0 0.0
    %1505 = vmatpush.msra.mxu0 0.0
    %1506 = vmatpush.msra.mxu0 0.0
    %1507 = vmatpush.msra.mxu0 0.0
    %1508 = vmatpush.msra.mxu0 %v1440
    %1509 = vmatpush.msra.mxu0 %v1439
    %1510 = vmatmul.f32.gmra.mxu0 %v1225
    %v1511 = vpop.f32.mrf.mxu0
    %v1512 = vadd.f32 %v1489, %v1511
    %1513 = vmatmul.f32.gmra.mxu0 %v1228
    %v1514 = vpop.f32.mrf.mxu0
    %v1515 = vadd.f32 %v1492, %v1514
    %1516 = vdwg.mxu0
    %v1517 = vadd.f32 %v1512, %v1459
    %v1518 = vadd.f32 %v1515, %v1459
    %v1519 = vxor.u32 %v1517, 2147483648
    %v1520 = vxor.u32 %v1518, 2147483648
    %v1521 = vmul.f32 %v1519, 1.442695
    %v1522 = vpow.pop %v1521
    %v1523 = vmul.f32 %v1520, 1.442695
    %v1524 = vpow.pop %v1523
    %v1525 = vadd.f32 %v1522, 1.0
    %v1526 = vadd.f32 %v1524, 1.0
    %v1527 = vrcp.pop %v1525
    %v1528 = vmul.f32 %v1525, %v1527
    %v1529 = vsub.f32 1.0, %v1528
    %v1530 = vmul.f32 %v1527, %v1529
    %v1531 = vadd.f32 %v1527, %v1530
    %vm1532 = vweird.f32 %v1525
    %vm1533 = vweird.f32 %v1527
    %vm1534 = vmor %vm1532, %vm1533
    %v1535 = vsel %vm1534, %v1527, %v1531
    %v1536 = vand.u32 2147483647, %v1525
    %vm1537 = vcmp.eq.f32.partialorder %v1536, 8.507059e+37
    %v1538 = vand.u32 %v1525, 2147483648
    %v1539 = vor.u32 1.1754944e-38, %v1538
    %v1540 = vsel %vm1537, %v1539, %v1535
    %v1541 = vmul.f32 1.0, %v1540
    %v1542 = vrcp.pop %v1526
    %v1543 = vmul.f32 %v1526, %v1542
    %v1544 = vsub.f32 1.0, %v1543
    %v1545 = vmul.f32 %v1542, %v1544
    %v1546 = vadd.f32 %v1542, %v1545
    %vm1547 = vweird.f32 %v1526
    %vm1548 = vweird.f32 %v1542
    %vm1549 = vmor %vm1547, %vm1548
    %v1550 = vsel %vm1549, %v1542, %v1546
    %v1551 = vand.u32 2147483647, %v1526
    %vm1552 = vcmp.eq.f32.partialorder %v1551, 8.507059e+37
    %v1553 = vand.u32 %v1526, 2147483648
    %v1554 = vor.u32 1.1754944e-38, %v1553
    %v1555 = vsel %vm1552, %v1554, %v1550
    %v1556 = vmul.f32 1.0, %v1555
    %1557 = vmatpush.msra.mxu0 0.0
    %1558 = vmatpush.msra.mxu0 0.0
    %1559 = vmatpush.msra.mxu0 0.0
    %1560 = vmatpush.msra.mxu0 0.0
    %1561 = vmatpush.msra.mxu0 0.0
    %1562 = vmatpush.msra.mxu0 0.0
    %1563 = vmatpush.msra.mxu0 0.0
    %1564 = vmatpush.msra.mxu0 0.0
    %1565 = vmatpush.msra.mxu0 0.0
    %1566 = vmatpush.msra.mxu0 0.0
    %1567 = vmatpush.msra.mxu0 0.0
    %1568 = vmatpush.msra.mxu0 0.0
    %1569 = vmatpush.msra.mxu0 0.0
    %1570 = vmatpush.msra.mxu0 0.0
    %1571 = vmatpush.msra.mxu0 %v1448
    %1572 = vmatpush.msra.mxu0 %v1447
    %1573 = vmatmul.f32.gmra.mxu0 %v955
    %v1574 = vpop.f32.mrf.mxu0
    %v1575 = vadd.f32 0.0, %v1574
    %1576 = vmatmul.f32.gmra.mxu0 %v955
    %v1577 = vpop.f32.mrf.mxu0
    %v1578 = vadd.f32 0.0, %v1577
    %1579 = vdwg.mxu0
    %1580 = vmatpush.msra.mxu0 0.0
    %1581 = vmatpush.msra.mxu0 0.0
    %1582 = vmatpush.msra.mxu0 0.0
    %1583 = vmatpush.msra.mxu0 0.0
    %1584 = vmatpush.msra.mxu0 0.0
    %1585 = vmatpush.msra.mxu0 0.0
    %1586 = vmatpush.msra.mxu0 0.0
    %1587 = vmatpush.msra.mxu0 0.0
    %1588 = vmatpush.msra.mxu0 0.0
    %1589 = vmatpush.msra.mxu0 0.0
    %1590 = vmatpush.msra.mxu0 0.0
    %1591 = vmatpush.msra.mxu0 0.0
    %1592 = vmatpush.msra.mxu0 0.0
    %1593 = vmatpush.msra.mxu0 0.0
    %1594 = vmatpush.msra.mxu0 %v1442
    %1595 = vmatpush.msra.mxu0 %v1441
    %1596 = vmatmul.f32.gmra.mxu0 %v1225
    %v1597 = vpop.f32.mrf.mxu0
    %v1598 = vadd.f32 %v1575, %v1597
    %1599 = vmatmul.f32.gmra.mxu0 %v1228
    %v1600 = vpop.f32.mrf.mxu0
    %v1601 = vadd.f32 %v1578, %v1600
    %1602 = vdwg.mxu0
    %v1603 = vadd.f32 %v1598, %v1463
    %v1604 = vadd.f32 %v1601, %v1463
    %v1605 = vxor.u32 %v1603, 2147483648
    %v1606 = vxor.u32 %v1604, 2147483648
    %v1607 = vmul.f32 %v1605, 1.442695
    %v1608 = vpow.pop %v1607
    %v1609 = vmul.f32 %v1606, 1.442695
    %v1610 = vpow.pop %v1609
    %v1611 = vadd.f32 %v1608, 1.0
    %v1612 = vadd.f32 %v1610, 1.0
    %v1613 = vrcp.pop %v1611
    %v1614 = vmul.f32 %v1611, %v1613
    %v1615 = vsub.f32 1.0, %v1614
    %v1616 = vmul.f32 %v1613, %v1615
    %v1617 = vadd.f32 %v1613, %v1616
    %vm1618 = vweird.f32 %v1611
    %vm1619 = vweird.f32 %v1613
    %vm1620 = vmor %vm1618, %vm1619
    %v1621 = vsel %vm1620, %v1613, %v1617
    %v1622 = vand.u32 2147483647, %v1611
    %vm1623 = vcmp.eq.f32.partialorder %v1622, 8.507059e+37
    %v1624 = vand.u32 %v1611, 2147483648
    %v1625 = vor.u32 1.1754944e-38, %v1624
    %v1626 = vsel %vm1623, %v1625, %v1621
    %v1627 = vmul.f32 1.0, %v1626
    %v1628 = vrcp.pop %v1612
    %v1629 = vmul.f32 %v1612, %v1628
    %v1630 = vsub.f32 1.0, %v1629
    %v1631 = vmul.f32 %v1628, %v1630
    %v1632 = vadd.f32 %v1628, %v1631
    %vm1633 = vweird.f32 %v1612
    %vm1634 = vweird.f32 %v1628
    %vm1635 = vmor %vm1633, %vm1634
    %v1636 = vsel %vm1635, %v1628, %v1632
    %v1637 = vand.u32 2147483647, %v1612
    %vm1638 = vcmp.eq.f32.partialorder %v1637, 8.507059e+37
    %v1639 = vand.u32 %v1612, 2147483648
    %v1640 = vor.u32 1.1754944e-38, %v1639
    %v1641 = vsel %vm1638, %v1640, %v1636
    %v1642 = vmul.f32 1.0, %v1641
    %1643 = vmatpush.msra.mxu0 0.0
    %1644 = vmatpush.msra.mxu0 0.0
    %1645 = vmatpush.msra.mxu0 0.0
    %1646 = vmatpush.msra.mxu0 0.0
    %1647 = vmatpush.msra.mxu0 0.0
    %1648 = vmatpush.msra.mxu0 0.0
    %1649 = vmatpush.msra.mxu0 0.0
    %1650 = vmatpush.msra.mxu0 0.0
    %1651 = vmatpush.msra.mxu0 0.0
    %1652 = vmatpush.msra.mxu0 0.0
    %1653 = vmatpush.msra.mxu0 0.0
    %1654 = vmatpush.msra.mxu0 0.0
    %1655 = vmatpush.msra.mxu0 0.0
    %1656 = vmatpush.msra.mxu0 0.0
    %1657 = vmatpush.msra.mxu0 %v1444
    %1658 = vmatpush.msra.mxu0 %v1443
    %1659 = vmatmul.f32.gmra.mxu0 %v1225
    %v1660 = vpop.f32.mrf.mxu0
    %v1661 = vadd.f32 %v1466, %v1660
    %1662 = vmatmul.f32.gmra.mxu0 %v1228
    %v1663 = vpop.f32.mrf.mxu0
    %v1664 = vadd.f32 %v1466, %v1663
    %1665 = vdwg.mxu0
    %1666 = vmatpush.msra.mxu0 0.0
    %1667 = vmatpush.msra.mxu0 0.0
    %1668 = vmatpush.msra.mxu0 0.0
    %1669 = vmatpush.msra.mxu0 0.0
    %1670 = vmatpush.msra.mxu0 0.0
    %1671 = vmatpush.msra.mxu0 0.0
    %1672 = vmatpush.msra.mxu0 0.0
    %1673 = vmatpush.msra.mxu0 0.0
    %1674 = vmatpush.msra.mxu0 0.0
    %1675 = vmatpush.msra.mxu0 0.0
    %1676 = vmatpush.msra.mxu0 0.0
    %1677 = vmatpush.msra.mxu0 0.0
    %1678 = vmatpush.msra.mxu0 0.0
    %1679 = vmatpush.msra.mxu0 0.0
    %1680 = vmatpush.msra.mxu0 %v1450
    %1681 = vmatpush.msra.mxu0 %v1449
    %1682 = vmatmul.f32.gmra.mxu0 %v955
    %v1683 = vpop.f32.mrf.mxu0
    %v1684 = vadd.f32 %v1469, %v1683
    %1685 = vmatmul.f32.gmra.mxu0 %v955
    %v1686 = vpop.f32.mrf.mxu0
    %v1687 = vadd.f32 %v1469, %v1686
    %1688 = vdwg.mxu0
    %v1689 = vmul.f32 %v1541, %v1684
    %v1690 = vmul.f32 %v1556, %v1687
    %v1691 = vadd.f32 %v1661, %v1689
    %v1692 = vadd.f32 %v1664, %v1690
    %v1693 = vtanh.pop %v1691
    %v1694 = vtanh.pop %v1692
    %v1695 = vsub.f32 1.0, %v1627
    %v1696 = vsub.f32 1.0, %v1642
    %v1697 = vmul.f32 %v1695, %v1693
    %v1698 = vmul.f32 %v1696, %v1694
    %v1699 = vmul.f32 %v1627, 0.0
    %v1700 = vmul.f32 %v1642, 0.0
    %v1701 = vadd.f32 %v1697, %v1699
    %v1702 = vadd.f32 %v1698, %v1700
    %v1704 = vsel %vm309, %v1701, 0
    %v1707 = vsel %vm309, %v1702, 0
    %1709 = vmatpush.msra.mxu0 0.0
    %1710 = vmatpush.msra.mxu0 0.0
    %1711 = vmatpush.msra.mxu0 0.0
    %1712 = vmatpush.msra.mxu0 0.0
    %1713 = vmatpush.msra.mxu0 0.0
    %1714 = vmatpush.msra.mxu0 0.0
    %1715 = vmatpush.msra.mxu0 0.0
    %1716 = vmatpush.msra.mxu0 0.0
    %1717 = vmatpush.msra.mxu0 0.0
    %1718 = vmatpush.msra.mxu0 0.0
    %1719 = vmatpush.msra.mxu0 0.0
    %1720 = vmatpush.msra.mxu0 0.0
    %1721 = vmatpush.msra.mxu0 0.0
    %1722 = vmatpush.msra.mxu0 0.0
    %1723 = vmatpush.msra.mxu0 %v1446
    %1724 = vmatpush.msra.mxu0 %v1445
    %1725 = vmatmul.f32.gmra.mxu0 %v1704
    %v1726 = vpop.f32.mrf.mxu0
    %v1727 = vadd.f32 0.0, %v1726
    %1728 = vmatmul.f32.gmra.mxu0 %v1707
    %v1729 = vpop.f32.mrf.mxu0
    %v1730 = vadd.f32 0.0, %v1729
    %1731 = vdwg.mxu0
    %1732 = vmatpush.msra.mxu0 0.0
    %1733 = vmatpush.msra.mxu0 0.0
    %1734 = vmatpush.msra.mxu0 0.0
    %1735 = vmatpush.msra.mxu0 0.0
    %1736 = vmatpush.msra.mxu0 0.0
    %1737 = vmatpush.msra.mxu0 0.0
    %1738 = vmatpush.msra.mxu0 0.0
    %1739 = vmatpush.msra.mxu0 0.0
    %1740 = vmatpush.msra.mxu0 0.0
    %1741 = vmatpush.msra.mxu0 0.0
    %1742 = vmatpush.msra.mxu0 0.0
    %1743 = vmatpush.msra.mxu0 0.0
    %1744 = vmatpush.msra.mxu0 0.0
    %1745 = vmatpush.msra.mxu0 0.0
    %1746 = vmatpush.msra.mxu0 %v1440
    %1747 = vmatpush.msra.mxu0 %v1439
    %1748 = vmatmul.f32.gmra.mxu0 %v981
    %v1749 = vpop.f32.mrf.mxu0
    %v1750 = vadd.f32 %v1727, %v1749
    %1751 = vmatmul.f32.gmra.mxu0 %v984
    %v1752 = vpop.f32.mrf.mxu0
    %v1753 = vadd.f32 %v1730, %v1752
    %1754 = vdwg.mxu0
    %v1755 = vadd.f32 %v1750, %v1459
    %v1756 = vadd.f32 %v1753, %v1459
    %v1757 = vxor.u32 %v1755, 2147483648
    %v1758 = vxor.u32 %v1756, 2147483648
    %v1759 = vmul.f32 %v1757, 1.442695
    %v1760 = vpow.pop %v1759
    %v1761 = vmul.f32 %v1758, 1.442695
    %v1762 = vpow.pop %v1761
    %v1763 = vadd.f32 %v1760, 1.0
    %v1764 = vadd.f32 %v1762, 1.0
    %v1765 = vrcp.pop %v1763
    %v1766 = vmul.f32 %v1763, %v1765
    %v1767 = vsub.f32 1.0, %v1766
    %v1768 = vmul.f32 %v1765, %v1767
    %v1769 = vadd.f32 %v1765, %v1768
    %vm1770 = vweird.f32 %v1763
    %vm1771 = vweird.f32 %v1765
    %vm1772 = vmor %vm1770, %vm1771
    %v1773 = vsel %vm1772, %v1765, %v1769
    %v1774 = vand.u32 2147483647, %v1763
    %vm1775 = vcmp.eq.f32.partialorder %v1774, 8.507059e+37
    %v1776 = vand.u32 %v1763, 2147483648
    %v1777 = vor.u32 1.1754944e-38, %v1776
    %v1778 = vsel %vm1775, %v1777, %v1773
    %v1779 = vmul.f32 1.0, %v1778
    %v1780 = vrcp.pop %v1764
    %v1781 = vmul.f32 %v1764, %v1780
    %v1782 = vsub.f32 1.0, %v1781
    %v1783 = vmul.f32 %v1780, %v1782
    %v1784 = vadd.f32 %v1780, %v1783
    %vm1785 = vweird.f32 %v1764
    %vm1786 = vweird.f32 %v1780
    %vm1787 = vmor %vm1785, %vm1786
    %v1788 = vsel %vm1787, %v1780, %v1784
    %v1789 = vand.u32 2147483647, %v1764
    %vm1790 = vcmp.eq.f32.partialorder %v1789, 8.507059e+37
    %v1791 = vand.u32 %v1764, 2147483648
    %v1792 = vor.u32 1.1754944e-38, %v1791
    %v1793 = vsel %vm1790, %v1792, %v1788
    %v1794 = vmul.f32 1.0, %v1793
    %1795 = vmatpush.msra.mxu0 0.0
    %1796 = vmatpush.msra.mxu0 0.0
    %1797 = vmatpush.msra.mxu0 0.0
    %1798 = vmatpush.msra.mxu0 0.0
    %1799 = vmatpush.msra.mxu0 0.0
    %1800 = vmatpush.msra.mxu0 0.0
    %1801 = vmatpush.msra.mxu0 0.0
    %1802 = vmatpush.msra.mxu0 0.0
    %1803 = vmatpush.msra.mxu0 0.0
    %1804 = vmatpush.msra.mxu0 0.0
    %1805 = vmatpush.msra.mxu0 0.0
    %1806 = vmatpush.msra.mxu0 0.0
    %1807 = vmatpush.msra.mxu0 0.0
    %1808 = vmatpush.msra.mxu0 0.0
    %1809 = vmatpush.msra.mxu0 %v1448
    %1810 = vmatpush.msra.mxu0 %v1447
    %1811 = vmatmul.f32.gmra.mxu0 %v1704
    %v1812 = vpop.f32.mrf.mxu0
    %v1813 = vadd.f32 0.0, %v1812
    %1814 = vmatmul.f32.gmra.mxu0 %v1707
    %v1815 = vpop.f32.mrf.mxu0
    %v1816 = vadd.f32 0.0, %v1815
    %1817 = vdwg.mxu0
    %1818 = vmatpush.msra.mxu0 0.0
    %1819 = vmatpush.msra.mxu0 0.0
    %1820 = vmatpush.msra.mxu0 0.0
    %1821 = vmatpush.msra.mxu0 0.0
    %1822 = vmatpush.msra.mxu0 0.0
    %1823 = vmatpush.msra.mxu0 0.0
    %1824 = vmatpush.msra.mxu0 0.0
    %1825 = vmatpush.msra.mxu0 0.0
    %1826 = vmatpush.msra.mxu0 0.0
    %1827 = vmatpush.msra.mxu0 0.0
    %1828 = vmatpush.msra.mxu0 0.0
    %1829 = vmatpush.msra.mxu0 0.0
    %1830 = vmatpush.msra.mxu0 0.0
    %1831 = vmatpush.msra.mxu0 0.0
    %1832 = vmatpush.msra.mxu0 %v1442
    %1833 = vmatpush.msra.mxu0 %v1441
    %1834 = vmatmul.f32.gmra.mxu0 %v981
    %v1835 = vpop.f32.mrf.mxu0
    %v1836 = vadd.f32 %v1813, %v1835
    %1837 = vmatmul.f32.gmra.mxu0 %v984
    %v1838 = vpop.f32.mrf.mxu0
    %v1839 = vadd.f32 %v1816, %v1838
    %1840 = vdwg.mxu0
    %v1841 = vadd.f32 %v1836, %v1463
    %v1842 = vadd.f32 %v1839, %v1463
    %v1843 = vxor.u32 %v1841, 2147483648
    %v1844 = vxor.u32 %v1842, 2147483648
    %v1845 = vmul.f32 %v1843, 1.442695
    %v1846 = vpow.pop %v1845
    %v1847 = vmul.f32 %v1844, 1.442695
    %v1848 = vpow.pop %v1847
    %v1849 = vadd.f32 %v1846, 1.0
    %v1850 = vadd.f32 %v1848, 1.0
    %v1851 = vrcp.pop %v1849
    %v1852 = vmul.f32 %v1849, %v1851
    %v1853 = vsub.f32 1.0, %v1852
    %v1854 = vmul.f32 %v1851, %v1853
    %v1855 = vadd.f32 %v1851, %v1854
    %vm1856 = vweird.f32 %v1849
    %vm1857 = vweird.f32 %v1851
    %vm1858 = vmor %vm1856, %vm1857
    %v1859 = vsel %vm1858, %v1851, %v1855
    %v1860 = vand.u32 2147483647, %v1849
    %vm1861 = vcmp.eq.f32.partialorder %v1860, 8.507059e+37
    %v1862 = vand.u32 %v1849, 2147483648
    %v1863 = vor.u32 1.1754944e-38, %v1862
    %v1864 = vsel %vm1861, %v1863, %v1859
    %v1865 = vmul.f32 1.0, %v1864
    %v1866 = vrcp.pop %v1850
    %v1867 = vmul.f32 %v1850, %v1866
    %v1868 = vsub.f32 1.0, %v1867
    %v1869 = vmul.f32 %v1866, %v1868
    %v1870 = vadd.f32 %v1866, %v1869
    %vm1871 = vweird.f32 %v1850
    %vm1872 = vweird.f32 %v1866
    %vm1873 = vmor %vm1871, %vm1872
    %v1874 = vsel %vm1873, %v1866, %v1870
    %v1875 = vand.u32 2147483647, %v1850
    %vm1876 = vcmp.eq.f32.partialorder %v1875, 8.507059e+37
    %v1877 = vand.u32 %v1850, 2147483648
    %v1878 = vor.u32 1.1754944e-38, %v1877
    %v1879 = vsel %vm1876, %v1878, %v1874
    %v1880 = vmul.f32 1.0, %v1879
    %1881 = vmatpush.msra.mxu0 0.0
    %1882 = vmatpush.msra.mxu0 0.0
    %1883 = vmatpush.msra.mxu0 0.0
    %1884 = vmatpush.msra.mxu0 0.0
    %1885 = vmatpush.msra.mxu0 0.0
    %1886 = vmatpush.msra.mxu0 0.0
    %1887 = vmatpush.msra.mxu0 0.0
    %1888 = vmatpush.msra.mxu0 0.0
    %1889 = vmatpush.msra.mxu0 0.0
    %1890 = vmatpush.msra.mxu0 0.0
    %1891 = vmatpush.msra.mxu0 0.0
    %1892 = vmatpush.msra.mxu0 0.0
    %1893 = vmatpush.msra.mxu0 0.0
    %1894 = vmatpush.msra.mxu0 0.0
    %1895 = vmatpush.msra.mxu0 %v1444
    %1896 = vmatpush.msra.mxu0 %v1443
    %1897 = vmatmul.f32.gmra.mxu0 %v981
    %v1898 = vpop.f32.mrf.mxu0
    %v1899 = vadd.f32 %v1466, %v1898
    %1900 = vmatmul.f32.gmra.mxu0 %v984
    %v1901 = vpop.f32.mrf.mxu0
    %v1902 = vadd.f32 %v1466, %v1901
    %1903 = vdwg.mxu0
    %1904 = vmatpush.msra.mxu0 0.0
    %1905 = vmatpush.msra.mxu0 0.0
    %1906 = vmatpush.msra.mxu0 0.0
    %1907 = vmatpush.msra.mxu0 0.0
    %1908 = vmatpush.msra.mxu0 0.0
    %1909 = vmatpush.msra.mxu0 0.0
    %1910 = vmatpush.msra.mxu0 0.0
    %1911 = vmatpush.msra.mxu0 0.0
    %1912 = vmatpush.msra.mxu0 0.0
    %1913 = vmatpush.msra.mxu0 0.0
    %1914 = vmatpush.msra.mxu0 0.0
    %1915 = vmatpush.msra.mxu0 0.0
    %1916 = vmatpush.msra.mxu0 0.0
    %1917 = vmatpush.msra.mxu0 0.0
    %1918 = vmatpush.msra.mxu0 %v1450
    %1919 = vmatpush.msra.mxu0 %v1449
    %1920 = vmatmul.f32.gmra.mxu0 %v1704
    %v1921 = vpop.f32.mrf.mxu0
    %v1922 = vadd.f32 %v1469, %v1921
    %1923 = vmatmul.f32.gmra.mxu0 %v1707
    %v1924 = vpop.f32.mrf.mxu0
    %v1925 = vadd.f32 %v1469, %v1924
    %1926 = vdwg.mxu0
    %v1927 = vmul.f32 %v1779, %v1922
    %v1928 = vmul.f32 %v1794, %v1925
    %v1929 = vadd.f32 %v1899, %v1927
    %v1930 = vadd.f32 %v1902, %v1928
    %v1931 = vtanh.pop %v1929
    %v1932 = vtanh.pop %v1930
    %v1933 = vsub.f32 1.0, %v1865
    %v1934 = vsub.f32 1.0, %v1880
    %v1935 = vmul.f32 %v1933, %v1931
    %v1936 = vmul.f32 %v1934, %v1932
    %v1937 = vmul.f32 %v1865, %v1701
    %v1938 = vmul.f32 %v1880, %v1702
    %v1939 = vadd.f32 %v1935, %v1937
    %v1940 = vadd.f32 %v1936, %v1938
    %1943 = vrot.lane.b32.xlu0 %v1939, 16
    %v1944 = vpop.permute.xlu0 %1943
    %1945 = vrot.lane.b32.xlu0 %v1940, 16
    %v1946 = vpop.permute.xlu0 %1945
    %v1949 = vsel %vm309, %v1193, %v1944
    %v1950 = vsel %vm309, %v1194, %v1946
    %1951 = vrot.lane.b32.xlu0 %v1701, 16
    %v1952 = vpop.permute.xlu0 %1951
    %1953 = vrot.lane.b32.xlu0 %v1702, 16
    %v1954 = vpop.permute.xlu0 %1953
    %v1957 = vsel %vm309, %v1437, %v1952
    %v1958 = vsel %vm309, %v1438, %v1954
    %1959 = vst.msk [vmem:[#allocation23] sm:$0xff] %vm314, %v1949
    %1960 = vst.msk [vmem:[#allocation23 + $0x8] sm:$0xff] %vm314, %v1950
    %1961 = vst.msk [vmem:[#allocation23 + $0x10] sm:$0xff] %vm314, %v1957
    %1962 = vst.msk [vmem:[#allocation23 + $0x18] sm:$0xff] %vm314, %v1958
    %1963 = vst.msk [vmem:[#allocation24] sm:$0xff] %vm309, %v1437
    %1964 = vst.msk [vmem:[#allocation24 + $0x8] sm:$0xff] %vm309, %v1438
    %1965 = vst.msk [vmem:[#allocation24 + $0x10] sm:$0xff] %vm309, %v1939
    %1966 = vst.msk [vmem:[#allocation24 + $0x18] sm:$0xff] %vm309, %v1940
    // Predicated region
    $region126: #{forward.1} parent=1 // pred_check
      _
    $region127: #{forward.1} parent=1 // pred_check_branch
      %1968 = sbr.rel (0) target = $region129
    $region128: #{forward.1} parent=1 // pred_region
      %1970 = vsyncadd [#allocation5], 0
      %s1971 = sshll.u32 [#allocation23], 4
      %s1972 = int_to_ptr.vmem [resolvable:$true] %s1971
      %s1973 = sshll.u32 %s19, 4
      %s1974 = int_to_ptr.hbm [resolvable:$true] %s1973
      %1979 = dma.vmem_to_hbm [thread:$0]  %s1972, 512, %s1974, [#allocation5], 128, 128, 8
    $region129: #{forward.1} parent=1 // pred_fallthru
      _
    // Predicated region
    $region130: #{forward.1} parent=1 // pred_check
      _
    $region131: #{forward.1} parent=1 // pred_check_branch
      %1981 = sbr.rel (0) target = $region133
    $region132: #{forward.1} parent=1 // pred_region
      %1983 = vsyncadd [#allocation25], 0
      %s1984 = sshll.u32 [#allocation24], 4
      %s1985 = int_to_ptr.vmem [resolvable:$true] %s1984
      %s1986 = sshll.u32 %s20, 4
      %s1987 = int_to_ptr.hbm [resolvable:$true] %s1986
      %1992 = dma.vmem_to_hbm [thread:$0]  %s1985, 512, %s1987, [#allocation25], 128, 128, 8
    $region133: #{forward.1} parent=1 // pred_fallthru
      _
    // Predicated region
    $region134: #{forward.1} parent=1 // pred_check
      _
    $region135: #{forward.1} parent=1 // pred_check_branch
      %1994 = sbr.rel (0) target = $region137
    $region136: #{forward.1} parent=1 // pred_region
      %1996 = dma.done [#allocation5], 512
    $region137: #{forward.1} parent=1 // pred_fallthru
      _
    // Predicated region
    $region138: #{forward.1} parent=1 // pred_check
      _
    $region139: #{forward.1} parent=1 // pred_check_branch
      %1998 = sbr.rel (0) target = $region141
    $region140: #{forward.1} parent=1 // pred_region
      %2000 = dma.done [#allocation25], 512
    $region141: #{forward.1} parent=1 // pred_fallthru
      _
    %2001 = vsyncpa [#allocation4], 1
    %2002 = vsyncpa [#allocation7], 1
    %2003 = vsyncpa [#allocation10], 1
    %2004 = vsyncpa [#allocation13], 1
    %2005 = vsyncpa [#allocation16], 1
    %2006 = vsyncpa [#allocation19], 1
    %2007 = vsyncpa [#allocation22], 1
    %2008 = vsyncpa [#allocation5], 1
    %2009 = vsyncpa [#allocation25], 1

</llo_original>
